<compile_context>
chip_gen: v7x
topology: tpu7x:2x2x1
jax: 0.10.0
libtpu: 0.0.40
codegen_flags: <defaults>
</compile_context>

<pallas_src>
import functools
import math

import jax
import jax.numpy as jnp
from jax.experimental import pallas as pl
from jax.experimental.pallas import tpu as pltpu

LN_EPS = 1e-5
NEG_INF = -1e9
VMEM_LIMIT_BYTES = 32 * 1024 * 1024


# ---------------------------------------------------------------------------
# Kernel 1: Conv1d projection (bias-free) as k shifted matmuls over the seq.
# ---------------------------------------------------------------------------
def _conv1d_kernel(x_ref, w_ref, o_ref, *, ksize):
    # x_ref: (1, L + 2*pad, C_in) bf16 ; w_ref: (k, C_in, C_out) bf16 (resident)
    # o_ref: (1, L_out, C_out) f32
    l_out = o_ref.shape[1]
    c_out = o_ref.shape[2]
    x = x_ref[0]
    acc = jnp.zeros((l_out, c_out), jnp.float32)
    for j in range(ksize):                                   # static taps
        acc += jnp.dot(x[j:j + l_out, :], w_ref[j],
                       preferred_element_type=jnp.float32)
    o_ref[0] = acc


def conv1d_proj(x, w, *, ksize):
    """nn.Conv1d(C_in, C_out, ksize, padding=(ksize-1)//2, bias=False) applied
    to channel-last input [B, L, C_in]; weight stored as [ksize, C_in, C_out]."""
    B, L, c_in = x.shape
    c_out = w.shape[-1]
    pad = (ksize - 1) // 2
    l_out = L + 2 * pad - ksize + 1
    x_pad = jnp.pad(x, ((0, 0), (pad, pad), (0, 0))).astype(jnp.bfloat16)
    w = w.astype(jnp.bfloat16)
    return pl.pallas_call(
        functools.partial(_conv1d_kernel, ksize=ksize),
        out_shape=jax.ShapeDtypeStruct((B, l_out, c_out), jnp.float32),
        grid=(B,),
        in_specs=[
            pl.BlockSpec((1, L + 2 * pad, c_in), lambda b: (b, 0, 0)),  # streamed
            pl.BlockSpec((ksize, c_in, c_out), lambda b: (0, 0, 0)),    # resident
        ],
        out_specs=pl.BlockSpec((1, l_out, c_out), lambda b: (b, 0, 0)),
        compiler_params=pltpu.CompilerParams(
            dimension_semantics=("parallel",),
            vmem_limit_bytes=VMEM_LIMIT_BYTES),
    )(x_pad, w)


# ---------------------------------------------------------------------------
# Kernel 2: one pre-LN transformer encoder layer (MulT-style), one sample/step.
# ---------------------------------------------------------------------------
def _encoder_layer_kernel(x_ref, wqkv_ref, bqkv_ref, wo_ref, bo_ref,
                          ln0w_ref, ln0b_ref, ln1w_ref, ln1b_ref,
                          w1_ref, b1_ref, w2_ref, b2_ref, o_ref,
                          *, num_heads, causal):
    f32 = jnp.float32
    bf16 = jnp.bfloat16
    x = x_ref[0]                                   # [L, E] f32 residual stream
    L, E = x.shape
    D = E // num_heads
    scaling = float(D) ** -0.5

    def layer_norm(v, w, b):
        mu = jnp.mean(v, axis=-1, keepdims=True)
        var = jnp.mean(jnp.square(v - mu), axis=-1, keepdims=True)
        return (v - mu) * jax.lax.rsqrt(var + LN_EPS) * w + b

    # ---- self-attention sub-block (normalize_before=True) ----
    y = layer_norm(x, ln0w_ref[...], ln0b_ref[...])
    qkv = jnp.dot(y.astype(bf16), wqkv_ref[...],
                  preferred_element_type=f32) + bqkv_ref[...]        # [L, 3E]
    q = qkv[:, 0:E] * scaling
    k = qkv[:, E:2 * E]
    v = qkv[:, 2 * E:3 * E]

    if causal:
        row = jax.lax.broadcasted_iota(jnp.int32, (L, L), 0)
        col = jax.lax.broadcasted_iota(jnp.int32, (L, L), 1)
        future = jnp.where(col > row, NEG_INF, 0.0).astype(f32)      # triu(.,1)

    attn = jnp.zeros((L, E), f32)
    for h in range(num_heads):                     # static head loop
        qh = q[:, h * D:(h + 1) * D].astype(bf16)
        kh = k[:, h * D:(h + 1) * D].astype(bf16)
        vh = v[:, h * D:(h + 1) * D].astype(bf16)
        s = jax.lax.dot_general(qh, kh, (((1,), (1,)), ((), ())),
                                preferred_element_type=f32)          # q @ k^T
        if causal:
            s = s + future
        s = s - jnp.max(s, axis=-1, keepdims=True)
        p = jnp.exp(s)
        p = p / jnp.sum(p, axis=-1, keepdims=True)                   # attn_dropout: identity
        oh = jnp.dot(p.astype(bf16), vh, preferred_element_type=f32)  # [L, D]
        # concat(heads) @ W_out  ==  sum_h  head_h @ W_out[h*D:(h+1)*D, :]
        attn += jnp.dot(oh.astype(bf16), wo_ref[h],
                        preferred_element_type=f32)
    x = x + attn + bo_ref[...]                     # res_dropout: identity

    # ---- feed-forward sub-block (pre-LN) ----
    y = layer_norm(x, ln1w_ref[...], ln1b_ref[...])
    h1 = jnp.dot(y.astype(bf16), w1_ref[...],
                 preferred_element_type=f32) + b1_ref[...]
    h1 = jnp.maximum(h1, 0.0)                      # relu (relu_dropout: identity)
    h2 = jnp.dot(h1.astype(bf16), w2_ref[...],
                 preferred_element_type=f32) + b2_ref[...]
    o_ref[0] = (x + h2).astype(o_ref.dtype)        # res_dropout: identity


def encoder_layer(x, lp, *, num_heads, causal):
    B, L, E = x.shape
    D = E // num_heads
    hidden = lp["w_fc1"].shape[-1]
    bf16 = jnp.bfloat16

    wqkv = lp["w_qkv"].astype(bf16)
    wo_h = lp["w_out"].astype(bf16).reshape(num_heads, D, E)   # per-head rows
    w1 = lp["w_fc1"].astype(bf16)
    w2 = lp["w_fc2"].astype(bf16)

    def resident(shape):
        # Constant index_map -> DMA'd once, reused by every batch-grid step.
        return pl.BlockSpec(shape, lambda b: (0,) * len(shape))

    flops = int(B * (2 * L * E * 3 * E        # qkv projection
                     + 4 * L * L * E          # q@k^T and p@v
                     + 2 * L * E * E          # output projection
                     + 4 * L * E * hidden))   # fc1 + fc2
    transcend = int(B * num_heads * L * L + 6 * B * L)
    bytes_acc = int(2 * B * L * E * 4
                    + (3 * E * E + E * E + E * hidden + hidden * E) * 2
                    + (3 * E + E + 4 * E + hidden + E) * 4)

    return pl.pallas_call(
        functools.partial(_encoder_layer_kernel,
                          num_heads=num_heads, causal=causal),
        out_shape=jax.ShapeDtypeStruct((B, L, E), jnp.float32),
        grid=(B,),
        in_specs=[
            pl.BlockSpec((1, L, E), lambda b: (b, 0, 0)),     # streamed activations
            resident((E, 3 * E)), resident((1, 3 * E)),       # W_qkv, b_qkv
            resident((num_heads, D, E)), resident((1, E)),    # W_out (per head), b_out
            resident((1, E)), resident((1, E)),               # LN0 gamma / beta
            resident((1, E)), resident((1, E)),               # LN1 gamma / beta
            resident((E, hidden)), resident((1, hidden)),     # fc1
            resident((hidden, E)), resident((1, E)),          # fc2
        ],
        out_specs=pl.BlockSpec((1, L, E), lambda b: (b, 0, 0)),
        compiler_params=pltpu.CompilerParams(
            dimension_semantics=("parallel",),
            vmem_limit_bytes=VMEM_LIMIT_BYTES),
        cost_estimate=pl.CostEstimate(flops=flops, transcendentals=transcend,
                                      bytes_accessed=bytes_acc),
    )(x, wqkv, lp["b_qkv"], wo_h, lp["b_out"],
      lp["ln0_w"], lp["ln0_b"], lp["ln1_w"], lp["ln1_b"],
      w1, lp["b_fc1"], w2, lp["b_fc2"])


# ---------------------------------------------------------------------------
# Kernel 3: final LayerNorm (applied only to the returned time step 0).
# ---------------------------------------------------------------------------
def _final_ln_kernel(x_ref, w_ref, b_ref, o_ref):
    v = x_ref[...]
    mu = jnp.mean(v, axis=-1, keepdims=True)
    var = jnp.mean(jnp.square(v - mu), axis=-1, keepdims=True)
    o_ref[...] = ((v - mu) * jax.lax.rsqrt(var + LN_EPS)
                  * w_ref[...] + b_ref[...]).astype(o_ref.dtype)


def final_layer_norm(x0, w, b):
    B, E = x0.shape
    return pl.pallas_call(
        _final_ln_kernel,
        out_shape=jax.ShapeDtypeStruct((B, E), jnp.float32),
    )(x0, w, b)


# ---------------------------------------------------------------------------
# Wrapper: sinusoidal positional embedding (fairseq/MulT semantics) + forward.
# ---------------------------------------------------------------------------
def sinusoidal_embedding_table(num_pos, dim):
    half = dim // 2
    freq = jnp.exp(jnp.arange(half, dtype=jnp.float32)
                   * -(math.log(10000.0) / (half - 1)))
    ang = jnp.arange(num_pos, dtype=jnp.float32)[:, None] * freq[None, :]
    emb = jnp.concatenate([jnp.sin(ang), jnp.cos(ang)], axis=1)
    if dim % 2 == 1:
        emb = jnp.concatenate([emb, jnp.zeros((num_pos, 1), jnp.float32)], axis=1)
    return emb.at[0].set(0.0)                      # padding_idx row


def _scaled_pos_embed(fused):
    """x = sqrt(E)*x_in + sinusoidal positions; position t+1 where channel 0 of
    x_in is non-zero, padding row otherwise (fairseq make_positions)."""
    B, L, E = fused.shape
    table = sinusoidal_embedding_table(L + 1, E)
    pos = jnp.where(fused[:, :, 0] != 0.0,
                    jnp.arange(1, L + 1, dtype=jnp.int32)[None, :], 0)
    return math.sqrt(E) * fused + table[pos]


@functools.partial(jax.jit, static_argnames=("num_heads", "causal", "ksizes"))
def transformer_based_forward(text_feat, audio_x, video_x, params, *,
                              num_heads, causal, ksizes):
    """[B, L, C_mod] modality features -> fused representation [B, fusion_dim]."""
    proj_l = conv1d_proj(text_feat, params["conv_l"], ksize=ksizes[0])
    proj_a = conv1d_proj(audio_x, params["conv_a"], ksize=ksizes[1])
    proj_v = conv1d_proj(video_x, params["conv_v"], ksize=ksizes[2])

    fused = jnp.concatenate([proj_l, proj_a, proj_v], axis=-1)   # [B, L, E]
    x = _scaled_pos_embed(fused)                  # embed_dropout: identity (eval)

    for lp in params["layers"]:
        x = encoder_layer(x, lp, num_heads=num_heads, causal=causal)

    # Final LayerNorm is per-position; only trans_seq[0] (time step 0) is returned.
    return final_layer_norm(x[:, 0, :], params["lnf_w"], params["lnf_b"])


# ---------------------------------------------------------------------------
# Pure-JAX f32 reference (mirrors the PyTorch eval-mode math).
# ---------------------------------------------------------------------------
def reference_forward(text_feat, audio_x, video_x, p, *, num_heads, causal, ksizes):
    def conv_ref(x, w, k):
        pad = (k - 1) // 2
        L = x.shape[1]
        l_out = L + 2 * pad - k + 1
        xp = jnp.pad(x, ((0, 0), (pad, pad), (0, 0)))
        out = jnp.zeros((x.shape[0], l_out, w.shape[-1]), jnp.float32)
        for j in range(k):
            out = out + jnp.einsum("blc,cd->bld", xp[:, j:j + l_out, :], w[j])
        return out

    fused = jnp.concatenate([conv_ref(text_feat, p["conv_l"], ksizes[0]),
                             conv_ref(audio_x, p["conv_a"], ksizes[1]),
                             conv_ref(video_x, p["conv_v"], ksizes[2])], axis=-1)
    x = _scaled_pos_embed(fused)
    B, L, E = x.shape
    D = E // num_heads

    def ln(v, w, b):
        mu = jnp.mean(v, -1, keepdims=True)
        var = jnp.mean(jnp.square(v - mu), -1, keepdims=True)
        return (v - mu) * jax.lax.rsqrt(var + LN_EPS) * w + b

    mask = jnp.triu(jnp.full((L, L), NEG_INF, jnp.float32), 1)
    for lp in p["layers"]:
        y = ln(x, lp["ln0_w"], lp["ln0_b"])
        qkv = y @ lp["w_qkv"] + lp["b_qkv"]
        q = qkv[..., 0:E] * (float(D) ** -0.5)
        k = qkv[..., E:2 * E]
        v = qkv[..., 2 * E:3 * E]
        heads = []
        for h in range(num_heads):
            qh, kh, vh = (t[..., h * D:(h + 1) * D] for t in (q, k, v))
            s = jnp.einsum("bld,bmd->blm", qh, kh)
            if causal:
                s = s + mask
            s = s - jnp.max(s, -1, keepdims=True)
            pr = jnp.exp(s)
            pr = pr / jnp.sum(pr, -1, keepdims=True)
            heads.append(jnp.einsum("blm,bmd->bld", pr, vh))
        x = x + jnp.concatenate(heads, -1) @ lp["w_out"] + lp["b_out"]
        y = ln(x, lp["ln1_w"], lp["ln1_b"])
        h1 = jnp.maximum(y @ lp["w_fc1"] + lp["b_fc1"], 0.0)
        x = x + h1 @ lp["w_fc2"] + lp["b_fc2"]
    return ln(x, p["lnf_w"], p["lnf_b"])[:, 0, :]


# ---------------------------------------------------------------------------
# Deterministic synthetic parameters (shapes follow transformer_based.__init__).
# ---------------------------------------------------------------------------
def init_params(key, *, orig_dims, fus_dims, n_layers, ksizes):
    E = sum(fus_dims)
    keys = iter(jax.random.split(key, 64))

    def unif(k, shape, fan_in):
        bound = 1.0 / math.sqrt(fan_in)
        return jax.random.uniform(k, shape, jnp.float32, -bound, bound)

    def ln_pair():
        return (1.0 + 0.1 * jax.random.normal(next(keys), (1, E), jnp.float32),
                0.1 * jax.random.normal(next(keys), (1, E), jnp.float32))

    p = {
        "conv_l": unif(next(keys), (ksizes[0], orig_dims[0], fus_dims[0]),
                       orig_dims[0] * ksizes[0]),
        "conv_a": unif(next(keys), (ksizes[1], orig_dims[1], fus_dims[1]),
                       orig_dims[1] * ksizes[1]),
        "conv_v": unif(next(keys), (ksizes[2], orig_dims[2], fus_dims[2]),
                       orig_dims[2] * ksizes[2]),
        "layers": [],
    }
    for _ in range(n_layers):
        ln0_w, ln0_b = ln_pair()
        ln1_w, ln1_b = ln_pair()
        p["layers"].append({
            "w_qkv": unif(next(keys), (E, 3 * E), E),
            "b_qkv": unif(next(keys), (1, 3 * E), E),
            "w_out": unif(next(keys), (E, E), E),
            "b_out": unif(next(keys), (1, E), E),
            "ln0_w": ln0_w, "ln0_b": ln0_b,
            "ln1_w": ln1_w, "ln1_b": ln1_b,
            "w_fc1": unif(next(keys), (E, 4 * E), E),
            "b_fc1": unif(next(keys), (1, 4 * E), E),
            "w_fc2": unif(next(keys), (4 * E, E), 4 * E),
            "b_fc2": unif(next(keys), (1, E), 4 * E),
        })
    p["lnf_w"], p["lnf_b"] = ln_pair()
    return p


if __name__ == "__main__":
    # Small shapes implied by the module: B, seq L, per-modality feature dims,
    # fus_d_l/a/v, fus_nheads, fus_layers, conv kernel sizes, attn_mask=True.
    B, L = 2, 8
    orig_dims = (32, 16, 16)      # stand-in for (BERT hidden, audio, video) dims
    fus_dims = (16, 8, 8)         # fusion_dim E = 32
    num_heads = 4
    n_layers = 2
    ksizes = (3, 3, 3)
    causal = True                 # args.fus_attn_mask

    key = jax.random.PRNGKey(0)
    k_t, k_a, k_v, k_p = jax.random.split(key, 4)
    text_feat = jax.random.normal(k_t, (B, L, orig_dims[0]), jnp.float32)
    audio_x = jax.random.normal(k_a, (B, L, orig_dims[1]), jnp.float32)
    video_x = jax.random.normal(k_v, (B, L, orig_dims[2]), jnp.float32)
    params = init_params(k_p, orig_dims=orig_dims, fus_dims=fus_dims,
                         n_layers=n_layers, ksizes=ksizes)

    out = transformer_based_forward(text_feat, audio_x, video_x, params,
                                    num_heads=num_heads, causal=causal,
                                    ksizes=ksizes)
    out = jax.block_until_ready(out)

    ref = reference_forward(text_feat, audio_x, video_x, params,
                            num_heads=num_heads, causal=causal, ksizes=ksizes)
    E = sum(fus_dims)
    assert out.shape == (B, E)
    # bf16 matmul operands (f32 accumulation, f32 residual stream) vs f32 ref.
    assert jnp.allclose(out, ref, atol=5e-2, rtol=5e-2), (
        f"mismatch vs reference, max abs diff {jnp.max(jnp.abs(out - ref))}")

    print("KERNEL_OK")
</pallas_src>

<mosaic_0001>
module attributes {stable_mosaic.version = 11 : i64} {
  func.func @_encoder_layer_kernel(%arg0: i32, %arg1: memref<1x8x32xf32, #tpu.memory_space<vmem>>, %arg2: memref<32x96xbf16, #tpu.memory_space<vmem>>, %arg3: memref<1x96xf32, #tpu.memory_space<vmem>>, %arg4: memref<4x8x32xbf16, #tpu.memory_space<vmem>>, %arg5: memref<1x32xf32, #tpu.memory_space<vmem>>, %arg6: memref<1x32xf32, #tpu.memory_space<vmem>>, %arg7: memref<1x32xf32, #tpu.memory_space<vmem>>, %arg8: memref<1x32xf32, #tpu.memory_space<vmem>>, %arg9: memref<1x32xf32, #tpu.memory_space<vmem>>, %arg10: memref<32x128xbf16, #tpu.memory_space<vmem>>, %arg11: memref<1x128xf32, #tpu.memory_space<vmem>>, %arg12: memref<128x32xbf16, #tpu.memory_space<vmem>>, %arg13: memref<1x32xf32, #tpu.memory_space<vmem>>, %arg14: memref<1x8x32xf32, #tpu.memory_space<vmem>>) attributes {dimension_semantics = [#tpu.dimension_semantics<parallel>], iteration_bounds = array<i64: 2>, scalar_prefetch = 0 : i64, scratch_operands = 0 : i64, tpu.core_type = #tpu.core_type<tc>, window_params = [{transform_indices = @transform_0, window_bounds = array<i64: 1, 8, 32>}, {pipeline_mode = #tpu.pipeline_mode<synchronous>, transform_indices = @transform_1, window_bounds = array<i64: 32, 96>}, {pipeline_mode = #tpu.pipeline_mode<synchronous>, transform_indices = @transform_2, window_bounds = array<i64: 1, 96>}, {pipeline_mode = #tpu.pipeline_mode<synchronous>, transform_indices = @transform_3, window_bounds = array<i64: 4, 8, 32>}, {pipeline_mode = #tpu.pipeline_mode<synchronous>, transform_indices = @transform_4, window_bounds = array<i64: 1, 32>}, {pipeline_mode = #tpu.pipeline_mode<synchronous>, transform_indices = @transform_5, window_bounds = array<i64: 1, 32>}, {pipeline_mode = #tpu.pipeline_mode<synchronous>, transform_indices = @transform_6, window_bounds = array<i64: 1, 32>}, {pipeline_mode = #tpu.pipeline_mode<synchronous>, transform_indices = @transform_7, window_bounds = array<i64: 1, 32>}, {pipeline_mode = #tpu.pipeline_mode<synchronous>, transform_indices = @transform_8, window_bounds = array<i64: 1, 32>}, {pipeline_mode = #tpu.pipeline_mode<synchronous>, transform_indices = @transform_9, window_bounds = array<i64: 32, 128>}, {pipeline_mode = #tpu.pipeline_mode<synchronous>, transform_indices = @transform_10, window_bounds = array<i64: 1, 128>}, {pipeline_mode = #tpu.pipeline_mode<synchronous>, transform_indices = @transform_11, window_bounds = array<i64: 128, 32>}, {pipeline_mode = #tpu.pipeline_mode<synchronous>, transform_indices = @transform_12, window_bounds = array<i64: 1, 32>}, {transform_indices = @transform_13, window_bounds = array<i64: 1, 8, 32>}]} {
    %c0 = arith.constant 0 : index
    %c0_0 = arith.constant 0 : index
    %c0_1 = arith.constant 0 : index
    %0 = vector.load %arg1[%c0, %c0_0, %c0_1] : memref<1x8x32xf32, #tpu.memory_space<vmem>>, vector<1x8x32xf32>
    %1 = vector.shape_cast %0 : vector<1x8x32xf32> to vector<8x32xf32>
    %c0_2 = arith.constant 0 : index
    %c0_3 = arith.constant 0 : index
    %2 = vector.load %arg6[%c0_2, %c0_3] : memref<1x32xf32, #tpu.memory_space<vmem>>, vector<1x32xf32>
    %c0_4 = arith.constant 0 : index
    %c0_5 = arith.constant 0 : index
    %3 = vector.load %arg7[%c0_4, %c0_5] : memref<1x32xf32, #tpu.memory_space<vmem>>, vector<1x32xf32>
    %cst = arith.constant dense<0.000000e+00> : vector<8xf32>
    %4 = vector.multi_reduction <add>, %1, %cst [1] : vector<8x32xf32> to vector<8xf32>
    %5 = vector.shape_cast %4 : vector<8xf32> to vector<8x1xf32>
    %cst_6 = arith.constant 3.200000e+01 : f32
    %6 = vector.broadcast %cst_6 : f32 to vector<8x1xf32>
    %7 = arith.divf %5, %6 : vector<8x1xf32>
    %8 = vector.broadcast %7 : vector<8x1xf32> to vector<8x32xf32>
    %9 = arith.subf %1, %8 : vector<8x32xf32>
    %10 = arith.mulf %9, %9 : vector<8x32xf32>
    %cst_7 = arith.constant dense<0.000000e+00> : vector<8xf32>
    %11 = vector.multi_reduction <add>, %10, %cst_7 [1] : vector<8x32xf32> to vector<8xf32>
    %12 = vector.shape_cast %11 : vector<8xf32> to vector<8x1xf32>
    %cst_8 = arith.constant 3.200000e+01 : f32
    %13 = vector.broadcast %cst_8 : f32 to vector<8x1xf32>
    %14 = arith.divf %12, %13 : vector<8x1xf32>
    %15 = vector.broadcast %7 : vector<8x1xf32> to vector<8x32xf32>
    %16 = arith.subf %1, %15 : vector<8x32xf32>
    %cst_9 = arith.constant 9.99999974E-6 : f32
    %17 = vector.broadcast %cst_9 : f32 to vector<8x1xf32>
    %18 = arith.addf %14, %17 : vector<8x1xf32>
    %19 = math.rsqrt %18 : vector<8x1xf32>
    %20 = vector.broadcast %19 : vector<8x1xf32> to vector<8x32xf32>
    %21 = arith.mulf %16, %20 : vector<8x32xf32>
    %22 = vector.broadcast %2 : vector<1x32xf32> to vector<8x32xf32>
    %23 = arith.mulf %21, %22 : vector<8x32xf32>
    %24 = vector.broadcast %3 : vector<1x32xf32> to vector<8x32xf32>
    %25 = arith.addf %23, %24 : vector<8x32xf32>
    %26 = arith.truncf %25 : vector<8x32xf32> to vector<8x32xbf16>
    %c0_10 = arith.constant 0 : index
    %c0_11 = arith.constant 0 : index
    %27 = vector.load %arg2[%c0_10, %c0_11] : memref<32x96xbf16, #tpu.memory_space<vmem>>, vector<32x96xbf16>
    %cst_12 = arith.constant dense<0.000000e+00> : vector<8x96xf32>
    %28 = tpu.matmul %26, %27, %cst_12 {dimension_numbers = #tpu.dot_dimension_numbers<[1], [0], [0], [1], [0, 0, 1, 1], [], []>} : vector<8x32xbf16>, vector<32x96xbf16>, vector<8x96xf32> -> vector<8x96xf32>
    %c0_13 = arith.constant 0 : index
    %c0_14 = arith.constant 0 : index
    %29 = vector.load %arg3[%c0_13, %c0_14] : memref<1x96xf32, #tpu.memory_space<vmem>>, vector<1x96xf32>
    %30 = vector.broadcast %29 : vector<1x96xf32> to vector<8x96xf32>
    %31 = arith.addf %28, %30 : vector<8x96xf32>
    %32 = vector.extract_strided_slice %31 {offsets = [0, 0], sizes = [8, 32], strides = [1, 1]} : vector<8x96xf32> to vector<8x32xf32>
    %cst_15 = arith.constant 0.353553385 : f32
    %33 = vector.broadcast %cst_15 : f32 to vector<8x32xf32>
    %34 = arith.mulf %32, %33 : vector<8x32xf32>
    %35 = vector.extract_strided_slice %31 {offsets = [0, 32], sizes = [8, 32], strides = [1, 1]} : vector<8x96xf32> to vector<8x32xf32>
    %36 = vector.extract_strided_slice %31 {offsets = [0, 64], sizes = [8, 32], strides = [1, 1]} : vector<8x96xf32> to vector<8x32xf32>
    %37 = tpu.iota {dimensions = array<i32: 0>} : vector<8x8xi32>
    %38 = tpu.iota {dimensions = array<i32: 1>} : vector<8x8xi32>
    %39 = arith.cmpi sgt, %38, %37 : vector<8x8xi32>
    %cst_16 = arith.constant -1.000000e+09 : f32
    %cst_17 = arith.constant 0.000000e+00 : f32
    %40 = vector.broadcast %cst_16 : f32 to vector<8x8xf32>
    %41 = vector.broadcast %cst_17 : f32 to vector<8x8xf32>
    %42 = arith.select %39, %40, %41 : vector<8x8xi1>, vector<8x8xf32>
    %cst_18 = arith.constant 0.000000e+00 : f32
    %43 = vector.broadcast %cst_18 : f32 to vector<8x32xf32>
    %44 = vector.extract_strided_slice %34 {offsets = [0, 0], sizes = [8, 8], strides = [1, 1]} : vector<8x32xf32> to vector<8x8xf32>
    %45 = arith.truncf %44 : vector<8x8xf32> to vector<8x8xbf16>
    %46 = vector.extract_strided_slice %35 {offsets = [0, 0], sizes = [8, 8], strides = [1, 1]} : vector<8x32xf32> to vector<8x8xf32>
    %47 = arith.truncf %46 : vector<8x8xf32> to vector<8x8xbf16>
    %48 = vector.extract_strided_slice %36 {offsets = [0, 0], sizes = [8, 8], strides = [1, 1]} : vector<8x32xf32> to vector<8x8xf32>
    %49 = arith.truncf %48 : vector<8x8xf32> to vector<8x8xbf16>
    %cst_19 = arith.constant dense<0.000000e+00> : vector<8x8xf32>
    %50 = tpu.matmul %45, %47, %cst_19 {dimension_numbers = #tpu.dot_dimension_numbers<[1], [1], [0], [0], [0, 0, 1, 0], [], []>} : vector<8x8xbf16>, vector<8x8xbf16>, vector<8x8xf32> -> vector<8x8xf32>
    %51 = arith.addf %50, %42 : vector<8x8xf32>
    %cst_20 = arith.constant dense<0xFF800000> : vector<8xf32>
    %52 = vector.multi_reduction <maximumf>, %51, %cst_20 [1] : vector<8x8xf32> to vector<8xf32>
    %53 = vector.shape_cast %52 : vector<8xf32> to vector<8x1xf32>
    %54 = vector.broadcast %53 : vector<8x1xf32> to vector<8x8xf32>
    %55 = arith.subf %51, %54 : vector<8x8xf32>
    %56 = math.exp %55 : vector<8x8xf32>
    %cst_21 = arith.constant dense<0.000000e+00> : vector<8xf32>
    %57 = vector.multi_reduction <add>, %56, %cst_21 [1] : vector<8x8xf32> to vector<8xf32>
    %58 = vector.shape_cast %57 : vector<8xf32> to vector<8x1xf32>
    %59 = vector.broadcast %58 : vector<8x1xf32> to vector<8x8xf32>
    %60 = arith.divf %56, %59 : vector<8x8xf32>
    %61 = arith.truncf %60 : vector<8x8xf32> to vector<8x8xbf16>
    %cst_22 = arith.constant dense<0.000000e+00> : vector<8x8xf32>
    %62 = tpu.matmul %61, %49, %cst_22 {dimension_numbers = #tpu.dot_dimension_numbers<[1], [0], [0], [1], [0, 0, 1, 1], [], []>} : vector<8x8xbf16>, vector<8x8xbf16>, vector<8x8xf32> -> vector<8x8xf32>
    %63 = arith.truncf %62 : vector<8x8xf32> to vector<8x8xbf16>
    %c0_23 = arith.constant 0 : index
    %c0_24 = arith.constant 0 : index
    %c0_25 = arith.constant 0 : index
    %64 = vector.load %arg4[%c0_23, %c0_24, %c0_25] : memref<4x8x32xbf16, #tpu.memory_space<vmem>>, vector<1x8x32xbf16>
    %65 = vector.shape_cast %64 : vector<1x8x32xbf16> to vector<8x32xbf16>
    %cst_26 = arith.constant dense<0.000000e+00> : vector<8x32xf32>
    %66 = tpu.matmul %63, %65, %cst_26 {dimension_numbers = #tpu.dot_dimension_numbers<[1], [0], [0], [1], [0, 0, 1, 1], [], []>} : vector<8x8xbf16>, vector<8x32xbf16>, vector<8x32xf32> -> vector<8x32xf32>
    %67 = arith.addf %43, %66 : vector<8x32xf32>
    %68 = vector.extract_strided_slice %34 {offsets = [0, 8], sizes = [8, 8], strides = [1, 1]} : vector<8x32xf32> to vector<8x8xf32>
    %69 = arith.truncf %68 : vector<8x8xf32> to vector<8x8xbf16>
    %70 = vector.extract_strided_slice %35 {offsets = [0, 8], sizes = [8, 8], strides = [1, 1]} : vector<8x32xf32> to vector<8x8xf32>
    %71 = arith.truncf %70 : vector<8x8xf32> to vector<8x8xbf16>
    %72 = vector.extract_strided_slice %36 {offsets = [0, 8], sizes = [8, 8], strides = [1, 1]} : vector<8x32xf32> to vector<8x8xf32>
    %73 = arith.truncf %72 : vector<8x8xf32> to vector<8x8xbf16>
    %cst_27 = arith.constant dense<0.000000e+00> : vector<8x8xf32>
    %74 = tpu.matmul %69, %71, %cst_27 {dimension_numbers = #tpu.dot_dimension_numbers<[1], [1], [0], [0], [0, 0, 1, 0], [], []>} : vector<8x8xbf16>, vector<8x8xbf16>, vector<8x8xf32> -> vector<8x8xf32>
    %75 = arith.addf %74, %42 : vector<8x8xf32>
    %cst_28 = arith.constant dense<0xFF800000> : vector<8xf32>
    %76 = vector.multi_reduction <maximumf>, %75, %cst_28 [1] : vector<8x8xf32> to vector<8xf32>
    %77 = vector.shape_cast %76 : vector<8xf32> to vector<8x1xf32>
    %78 = vector.broadcast %77 : vector<8x1xf32> to vector<8x8xf32>
    %79 = arith.subf %75, %78 : vector<8x8xf32>
    %80 = math.exp %79 : vector<8x8xf32>
    %cst_29 = arith.constant dense<0.000000e+00> : vector<8xf32>
    %81 = vector.multi_reduction <add>, %80, %cst_29 [1] : vector<8x8xf32> to vector<8xf32>
    %82 = vector.shape_cast %81 : vector<8xf32> to vector<8x1xf32>
    %83 = vector.broadcast %82 : vector<8x1xf32> to vector<8x8xf32>
    %84 = arith.divf %80, %83 : vector<8x8xf32>
    %85 = arith.truncf %84 : vector<8x8xf32> to vector<8x8xbf16>
    %cst_30 = arith.constant dense<0.000000e+00> : vector<8x8xf32>
    %86 = tpu.matmul %85, %73, %cst_30 {dimension_numbers = #tpu.dot_dimension_numbers<[1], [0], [0], [1], [0, 0, 1, 1], [], []>} : vector<8x8xbf16>, vector<8x8xbf16>, vector<8x8xf32> -> vector<8x8xf32>
    %87 = arith.truncf %86 : vector<8x8xf32> to vector<8x8xbf16>
    %c1 = arith.constant 1 : index
    %c0_31 = arith.constant 0 : index
    %c0_32 = arith.constant 0 : index
    %88 = vector.load %arg4[%c1, %c0_31, %c0_32] : memref<4x8x32xbf16, #tpu.memory_space<vmem>>, vector<1x8x32xbf16>
    %89 = vector.shape_cast %88 : vector<1x8x32xbf16> to vector<8x32xbf16>
    %cst_33 = arith.constant dense<0.000000e+00> : vector<8x32xf32>
    %90 = tpu.matmul %87, %89, %cst_33 {dimension_numbers = #tpu.dot_dimension_numbers<[1], [0], [0], [1], [0, 0, 1, 1], [], []>} : vector<8x8xbf16>, vector<8x32xbf16>, vector<8x32xf32> -> vector<8x32xf32>
    %91 = arith.addf %67, %90 : vector<8x32xf32>
    %92 = vector.extract_strided_slice %34 {offsets = [0, 16], sizes = [8, 8], strides = [1, 1]} : vector<8x32xf32> to vector<8x8xf32>
    %93 = arith.truncf %92 : vector<8x8xf32> to vector<8x8xbf16>
    %94 = vector.extract_strided_slice %35 {offsets = [0, 16], sizes = [8, 8], strides = [1, 1]} : vector<8x32xf32> to vector<8x8xf32>
    %95 = arith.truncf %94 : vector<8x8xf32> to vector<8x8xbf16>
    %96 = vector.extract_strided_slice %36 {offsets = [0, 16], sizes = [8, 8], strides = [1, 1]} : vector<8x32xf32> to vector<8x8xf32>
    %97 = arith.truncf %96 : vector<8x8xf32> to vector<8x8xbf16>
    %cst_34 = arith.constant dense<0.000000e+00> : vector<8x8xf32>
    %98 = tpu.matmul %93, %95, %cst_34 {dimension_numbers = #tpu.dot_dimension_numbers<[1], [1], [0], [0], [0, 0, 1, 0], [], []>} : vector<8x8xbf16>, vector<8x8xbf16>, vector<8x8xf32> -> vector<8x8xf32>
    %99 = arith.addf %98, %42 : vector<8x8xf32>
    %cst_35 = arith.constant dense<0xFF800000> : vector<8xf32>
    %100 = vector.multi_reduction <maximumf>, %99, %cst_35 [1] : vector<8x8xf32> to vector<8xf32>
    %101 = vector.shape_cast %100 : vector<8xf32> to vector<8x1xf32>
    %102 = vector.broadcast %101 : vector<8x1xf32> to vector<8x8xf32>
    %103 = arith.subf %99, %102 : vector<8x8xf32>
    %104 = math.exp %103 : vector<8x8xf32>
    %cst_36 = arith.constant dense<0.000000e+00> : vector<8xf32>
    %105 = vector.multi_reduction <add>, %104, %cst_36 [1] : vector<8x8xf32> to vector<8xf32>
    %106 = vector.shape_cast %105 : vector<8xf32> to vector<8x1xf32>
    %107 = vector.broadcast %106 : vector<8x1xf32> to vector<8x8xf32>
    %108 = arith.divf %104, %107 : vector<8x8xf32>
    %109 = arith.truncf %108 : vector<8x8xf32> to vector<8x8xbf16>
    %cst_37 = arith.constant dense<0.000000e+00> : vector<8x8xf32>
    %110 = tpu.matmul %109, %97, %cst_37 {dimension_numbers = #tpu.dot_dimension_numbers<[1], [0], [0], [1], [0, 0, 1, 1], [], []>} : vector<8x8xbf16>, vector<8x8xbf16>, vector<8x8xf32> -> vector<8x8xf32>
    %111 = arith.truncf %110 : vector<8x8xf32> to vector<8x8xbf16>
    %c2 = arith.constant 2 : index
    %c0_38 = arith.constant 0 : index
    %c0_39 = arith.constant 0 : index
    %112 = vector.load %arg4[%c2, %c0_38, %c0_39] : memref<4x8x32xbf16, #tpu.memory_space<vmem>>, vector<1x8x32xbf16>
    %113 = vector.shape_cast %112 : vector<1x8x32xbf16> to vector<8x32xbf16>
    %cst_40 = arith.constant dense<0.000000e+00> : vector<8x32xf32>
    %114 = tpu.matmul %111, %113, %cst_40 {dimension_numbers = #tpu.dot_dimension_numbers<[1], [0], [0], [1], [0, 0, 1, 1], [], []>} : vector<8x8xbf16>, vector<8x32xbf16>, vector<8x32xf32> -> vector<8x32xf32>
    %115 = arith.addf %91, %114 : vector<8x32xf32>
    %116 = vector.extract_strided_slice %34 {offsets = [0, 24], sizes = [8, 8], strides = [1, 1]} : vector<8x32xf32> to vector<8x8xf32>
    %117 = arith.truncf %116 : vector<8x8xf32> to vector<8x8xbf16>
    %118 = vector.extract_strided_slice %35 {offsets = [0, 24], sizes = [8, 8], strides = [1, 1]} : vector<8x32xf32> to vector<8x8xf32>
    %119 = arith.truncf %118 : vector<8x8xf32> to vector<8x8xbf16>
    %120 = vector.extract_strided_slice %36 {offsets = [0, 24], sizes = [8, 8], strides = [1, 1]} : vector<8x32xf32> to vector<8x8xf32>
    %121 = arith.truncf %120 : vector<8x8xf32> to vector<8x8xbf16>
    %cst_41 = arith.constant dense<0.000000e+00> : vector<8x8xf32>
    %122 = tpu.matmul %117, %119, %cst_41 {dimension_numbers = #tpu.dot_dimension_numbers<[1], [1], [0], [0], [0, 0, 1, 0], [], []>} : vector<8x8xbf16>, vector<8x8xbf16>, vector<8x8xf32> -> vector<8x8xf32>
    %123 = arith.addf %122, %42 : vector<8x8xf32>
    %cst_42 = arith.constant dense<0xFF800000> : vector<8xf32>
    %124 = vector.multi_reduction <maximumf>, %123, %cst_42 [1] : vector<8x8xf32> to vector<8xf32>
    %125 = vector.shape_cast %124 : vector<8xf32> to vector<8x1xf32>
    %126 = vector.broadcast %125 : vector<8x1xf32> to vector<8x8xf32>
    %127 = arith.subf %123, %126 : vector<8x8xf32>
    %128 = math.exp %127 : vector<8x8xf32>
    %cst_43 = arith.constant dense<0.000000e+00> : vector<8xf32>
    %129 = vector.multi_reduction <add>, %128, %cst_43 [1] : vector<8x8xf32> to vector<8xf32>
    %130 = vector.shape_cast %129 : vector<8xf32> to vector<8x1xf32>
    %131 = vector.broadcast %130 : vector<8x1xf32> to vector<8x8xf32>
    %132 = arith.divf %128, %131 : vector<8x8xf32>
    %133 = arith.truncf %132 : vector<8x8xf32> to vector<8x8xbf16>
    %cst_44 = arith.constant dense<0.000000e+00> : vector<8x8xf32>
    %134 = tpu.matmul %133, %121, %cst_44 {dimension_numbers = #tpu.dot_dimension_numbers<[1], [0], [0], [1], [0, 0, 1, 1], [], []>} : vector<8x8xbf16>, vector<8x8xbf16>, vector<8x8xf32> -> vector<8x8xf32>
    %135 = arith.truncf %134 : vector<8x8xf32> to vector<8x8xbf16>
    %c3 = arith.constant 3 : index
    %c0_45 = arith.constant 0 : index
    %c0_46 = arith.constant 0 : index
    %136 = vector.load %arg4[%c3, %c0_45, %c0_46] : memref<4x8x32xbf16, #tpu.memory_space<vmem>>, vector<1x8x32xbf16>
    %137 = vector.shape_cast %136 : vector<1x8x32xbf16> to vector<8x32xbf16>
    %cst_47 = arith.constant dense<0.000000e+00> : vector<8x32xf32>
    %138 = tpu.matmul %135, %137, %cst_47 {dimension_numbers = #tpu.dot_dimension_numbers<[1], [0], [0], [1], [0, 0, 1, 1], [], []>} : vector<8x8xbf16>, vector<8x32xbf16>, vector<8x32xf32> -> vector<8x32xf32>
    %139 = arith.addf %115, %138 : vector<8x32xf32>
    %140 = arith.addf %1, %139 : vector<8x32xf32>
    %c0_48 = arith.constant 0 : index
    %c0_49 = arith.constant 0 : index
    %141 = vector.load %arg5[%c0_48, %c0_49] : memref<1x32xf32, #tpu.memory_space<vmem>>, vector<1x32xf32>
    %142 = vector.broadcast %141 : vector<1x32xf32> to vector<8x32xf32>
    %143 = arith.addf %140, %142 : vector<8x32xf32>
    %c0_50 = arith.constant 0 : index
    %c0_51 = arith.constant 0 : index
    %144 = vector.load %arg8[%c0_50, %c0_51] : memref<1x32xf32, #tpu.memory_space<vmem>>, vector<1x32xf32>
    %c0_52 = arith.constant 0 : index
    %c0_53 = arith.constant 0 : index
    %145 = vector.load %arg9[%c0_52, %c0_53] : memref<1x32xf32, #tpu.memory_space<vmem>>, vector<1x32xf32>
    %cst_54 = arith.constant dense<0.000000e+00> : vector<8xf32>
    %146 = vector.multi_reduction <add>, %143, %cst_54 [1] : vector<8x32xf32> to vector<8xf32>
    %147 = vector.shape_cast %146 : vector<8xf32> to vector<8x1xf32>
    %cst_55 = arith.constant 3.200000e+01 : f32
    %148 = vector.broadcast %cst_55 : f32 to vector<8x1xf32>
    %149 = arith.divf %147, %148 : vector<8x1xf32>
    %150 = vector.broadcast %149 : vector<8x1xf32> to vector<8x32xf32>
    %151 = arith.subf %143, %150 : vector<8x32xf32>
    %152 = arith.mulf %151, %151 : vector<8x32xf32>
    %cst_56 = arith.constant dense<0.000000e+00> : vector<8xf32>
    %153 = vector.multi_reduction <add>, %152, %cst_56 [1] : vector<8x32xf32> to vector<8xf32>
    %154 = vector.shape_cast %153 : vector<8xf32> to vector<8x1xf32>
    %cst_57 = arith.constant 3.200000e+01 : f32
    %155 = vector.broadcast %cst_57 : f32 to vector<8x1xf32>
    %156 = arith.divf %154, %155 : vector<8x1xf32>
    %157 = vector.broadcast %149 : vector<8x1xf32> to vector<8x32xf32>
    %158 = arith.subf %143, %157 : vector<8x32xf32>
    %cst_58 = arith.constant 9.99999974E-6 : f32
    %159 = vector.broadcast %cst_58 : f32 to vector<8x1xf32>
    %160 = arith.addf %156, %159 : vector<8x1xf32>
    %161 = math.rsqrt %160 : vector<8x1xf32>
    %162 = vector.broadcast %161 : vector<8x1xf32> to vector<8x32xf32>
    %163 = arith.mulf %158, %162 : vector<8x32xf32>
    %164 = vector.broadcast %144 : vector<1x32xf32> to vector<8x32xf32>
    %165 = arith.mulf %163, %164 : vector<8x32xf32>
    %166 = vector.broadcast %145 : vector<1x32xf32> to vector<8x32xf32>
    %167 = arith.addf %165, %166 : vector<8x32xf32>
    %168 = arith.truncf %167 : vector<8x32xf32> to vector<8x32xbf16>
    %c0_59 = arith.constant 0 : index
    %c0_60 = arith.constant 0 : index
    %169 = vector.load %arg10[%c0_59, %c0_60] : memref<32x128xbf16, #tpu.memory_space<vmem>>, vector<32x128xbf16>
    %cst_61 = arith.constant dense<0.000000e+00> : vector<8x128xf32>
    %170 = tpu.matmul %168, %169, %cst_61 {dimension_numbers = #tpu.dot_dimension_numbers<[1], [0], [0], [1], [0, 0, 1, 1], [], []>} : vector<8x32xbf16>, vector<32x128xbf16>, vector<8x128xf32> -> vector<8x128xf32>
    %c0_62 = arith.constant 0 : index
    %c0_63 = arith.constant 0 : index
    %171 = vector.load %arg11[%c0_62, %c0_63] : memref<1x128xf32, #tpu.memory_space<vmem>>, vector<1x128xf32>
    %172 = vector.broadcast %171 : vector<1x128xf32> to vector<8x128xf32>
    %173 = arith.addf %170, %172 : vector<8x128xf32>
    %cst_64 = arith.constant 0.000000e+00 : f32
    %174 = vector.broadcast %cst_64 : f32 to vector<8x128xf32>
    %175 = arith.maximumf %173, %174 : vector<8x128xf32>
    %176 = arith.truncf %175 : vector<8x128xf32> to vector<8x128xbf16>
    %c0_65 = arith.constant 0 : index
    %c0_66 = arith.constant 0 : index
    %177 = vector.load %arg12[%c0_65, %c0_66] : memref<128x32xbf16, #tpu.memory_space<vmem>>, vector<128x32xbf16>
    %cst_67 = arith.constant dense<0.000000e+00> : vector<8x32xf32>
    %178 = tpu.matmul %176, %177, %cst_67 {dimension_numbers = #tpu.dot_dimension_numbers<[1], [0], [0], [1], [0, 0, 1, 1], [], []>} : vector<8x128xbf16>, vector<128x32xbf16>, vector<8x32xf32> -> vector<8x32xf32>
    %c0_68 = arith.constant 0 : index
    %c0_69 = arith.constant 0 : index
    %179 = vector.load %arg13[%c0_68, %c0_69] : memref<1x32xf32, #tpu.memory_space<vmem>>, vector<1x32xf32>
    %180 = vector.broadcast %179 : vector<1x32xf32> to vector<8x32xf32>
    %181 = arith.addf %178, %180 : vector<8x32xf32>
    %182 = arith.addf %143, %181 : vector<8x32xf32>
    %c0_70 = arith.constant 0 : index
    %c0_71 = arith.constant 0 : index
    %c0_72 = arith.constant 0 : index
    %183 = vector.load %arg14[%c0_70, %c0_71, %c0_72] : memref<1x8x32xf32, #tpu.memory_space<vmem>>, vector<1x8x32xf32>
    %184 = vector.shape_cast %183 : vector<1x8x32xf32> to vector<8x32xf32>
    %185 = vector.shape_cast %182 : vector<8x32xf32> to vector<1x8x32xf32>
    tpu.vector_store %arg14[%c0_70, %c0_71, %c0_72], %185 {strides = array<i32>} : memref<1x8x32xf32, #tpu.memory_space<vmem>>, vector<1x8x32xf32>,
    return
  }
  func.func @transform_0(%arg0: i32) -> (i32, i32, i32) {
    %c0_i32 = arith.constant 0 : i32
    %c0_i32_0 = arith.constant 0 : i32
    %c0_i32_1 = arith.constant 0 : i32
    return %arg0, %c0_i32, %c0_i32_0 : i32, i32, i32
  }
  func.func @transform_1(%arg0: i32) -> (i32, i32) {
    %c0_i32 = arith.constant 0 : i32
    %c0_i32_0 = arith.constant 0 : i32
    %c0_i32_1 = arith.constant 0 : i32
    return %c0_i32, %c0_i32_0 : i32, i32
  }
  func.func @transform_2(%arg0: i32) -> (i32, i32) {
    %c0_i32 = arith.constant 0 : i32
    %c0_i32_0 = arith.constant 0 : i32
    %c0_i32_1 = arith.constant 0 : i32
    return %c0_i32, %c0_i32_0 : i32, i32
  }
  func.func @transform_3(%arg0: i32) -> (i32, i32, i32) {
    %c0_i32 = arith.constant 0 : i32
    %c0_i32_0 = arith.constant 0 : i32
    %c0_i32_1 = arith.constant 0 : i32
    %c0_i32_2 = arith.constant 0 : i32
    return %c0_i32, %c0_i32_0, %c0_i32_1 : i32, i32, i32
  }
  func.func @transform_4(%arg0: i32) -> (i32, i32) {
    %c0_i32 = arith.constant 0 : i32
    %c0_i32_0 = arith.constant 0 : i32
    %c0_i32_1 = arith.constant 0 : i32
    return %c0_i32, %c0_i32_0 : i32, i32
  }
  func.func @transform_5(%arg0: i32) -> (i32, i32) {
    %c0_i32 = arith.constant 0 : i32
    %c0_i32_0 = arith.constant 0 : i32
    %c0_i32_1 = arith.constant 0 : i32
    return %c0_i32, %c0_i32_0 : i32, i32
  }
  func.func @transform_6(%arg0: i32) -> (i32, i32) {
    %c0_i32 = arith.constant 0 : i32
    %c0_i32_0 = arith.constant 0 : i32
    %c0_i32_1 = arith.constant 0 : i32
    return %c0_i32, %c0_i32_0 : i32, i32
  }
  func.func @transform_7(%arg0: i32) -> (i32, i32) {
    %c0_i32 = arith.constant 0 : i32
    %c0_i32_0 = arith.constant 0 : i32
    %c0_i32_1 = arith.constant 0 : i32
    return %c0_i32, %c0_i32_0 : i32, i32
  }
  func.func @transform_8(%arg0: i32) -> (i32, i32) {
    %c0_i32 = arith.constant 0 : i32
    %c0_i32_0 = arith.constant 0 : i32
    %c0_i32_1 = arith.constant 0 : i32
    return %c0_i32, %c0_i32_0 : i32, i32
  }
  func.func @transform_9(%arg0: i32) -> (i32, i32) {
    %c0_i32 = arith.constant 0 : i32
    %c0_i32_0 = arith.constant 0 : i32
    %c0_i32_1 = arith.constant 0 : i32
    return %c0_i32, %c0_i32_0 : i32, i32
  }
  func.func @transform_10(%arg0: i32) -> (i32, i32) {
    %c0_i32 = arith.constant 0 : i32
    %c0_i32_0 = arith.constant 0 : i32
    %c0_i32_1 = arith.constant 0 : i32
    return %c0_i32, %c0_i32_0 : i32, i32
  }
  func.func @transform_11(%arg0: i32) -> (i32, i32) {
    %c0_i32 = arith.constant 0 : i32
    %c0_i32_0 = arith.constant 0 : i32
    %c0_i32_1 = arith.constant 0 : i32
    return %c0_i32, %c0_i32_0 : i32, i32
  }
  func.func @transform_12(%arg0: i32) -> (i32, i32) {
    %c0_i32 = arith.constant 0 : i32
    %c0_i32_0 = arith.constant 0 : i32
    %c0_i32_1 = arith.constant 0 : i32
    return %c0_i32, %c0_i32_0 : i32, i32
  }
  func.func @transform_13(%arg0: i32) -> (i32, i32, i32) {
    %c0_i32 = arith.constant 0 : i32
    %c0_i32_0 = arith.constant 0 : i32
    %c0_i32_1 = arith.constant 0 : i32
    return %arg0, %c0_i32, %c0_i32_0 : i32, i32, i32
  }
}

module attributes {stable_mosaic.version = 11 : i64} {
  func.func @_conv1d_kernel(%arg0: i32, %arg1: memref<1x10x32xbf16, #tpu.memory_space<vmem>>, %arg2: memref<3x32x16xbf16, #tpu.memory_space<vmem>>, %arg3: memref<1x8x16xf32, #tpu.memory_space<vmem>>) attributes {dimension_semantics = [#tpu.dimension_semantics<parallel>], iteration_bounds = array<i64: 2>, scalar_prefetch = 0 : i64, scratch_operands = 0 : i64, tpu.core_type = #tpu.core_type<tc>, window_params = [{transform_indices = @transform_0, window_bounds = array<i64: 1, 10, 32>}, {pipeline_mode = #tpu.pipeline_mode<synchronous>, transform_indices = @transform_1, window_bounds = array<i64: 3, 32, 16>}, {transform_indices = @transform_2, window_bounds = array<i64: 1, 8, 16>}]} {
    %c0 = arith.constant 0 : index
    %c0_0 = arith.constant 0 : index
    %c0_1 = arith.constant 0 : index
    %0 = vector.load %arg1[%c0, %c0_0, %c0_1] : memref<1x10x32xbf16, #tpu.memory_space<vmem>>, vector<1x10x32xbf16>
    %1 = vector.shape_cast %0 : vector<1x10x32xbf16> to vector<10x32xbf16>
    %cst = arith.constant 0.000000e+00 : f32
    %2 = vector.broadcast %cst : f32 to vector<8x16xf32>
    %3 = vector.extract_strided_slice %1 {offsets = [0, 0], sizes = [8, 32], strides = [1, 1]} : vector<10x32xbf16> to vector<8x32xbf16>
    %c0_2 = arith.constant 0 : index
    %c0_3 = arith.constant 0 : index
    %c0_4 = arith.constant 0 : index
    %4 = vector.load %arg2[%c0_2, %c0_3, %c0_4] : memref<3x32x16xbf16, #tpu.memory_space<vmem>>, vector<1x32x16xbf16>
    %5 = vector.shape_cast %4 : vector<1x32x16xbf16> to vector<32x16xbf16>
    %cst_5 = arith.constant dense<0.000000e+00> : vector<8x16xf32>
    %6 = tpu.matmul %3, %5, %cst_5 {dimension_numbers = #tpu.dot_dimension_numbers<[1], [0], [0], [1], [0, 0, 1, 1], [], []>} : vector<8x32xbf16>, vector<32x16xbf16>, vector<8x16xf32> -> vector<8x16xf32>
    %7 = arith.addf %2, %6 : vector<8x16xf32>
    %8 = vector.extract_strided_slice %1 {offsets = [1, 0], sizes = [8, 32], strides = [1, 1]} : vector<10x32xbf16> to vector<8x32xbf16>
    %c1 = arith.constant 1 : index
    %c0_6 = arith.constant 0 : index
    %c0_7 = arith.constant 0 : index
    %9 = vector.load %arg2[%c1, %c0_6, %c0_7] : memref<3x32x16xbf16, #tpu.memory_space<vmem>>, vector<1x32x16xbf16>
    %10 = vector.shape_cast %9 : vector<1x32x16xbf16> to vector<32x16xbf16>
    %cst_8 = arith.constant dense<0.000000e+00> : vector<8x16xf32>
    %11 = tpu.matmul %8, %10, %cst_8 {dimension_numbers = #tpu.dot_dimension_numbers<[1], [0], [0], [1], [0, 0, 1, 1], [], []>} : vector<8x32xbf16>, vector<32x16xbf16>, vector<8x16xf32> -> vector<8x16xf32>
    %12 = arith.addf %7, %11 : vector<8x16xf32>
    %13 = vector.extract_strided_slice %1 {offsets = [2, 0], sizes = [8, 32], strides = [1, 1]} : vector<10x32xbf16> to vector<8x32xbf16>
    %c2 = arith.constant 2 : index
    %c0_9 = arith.constant 0 : index
    %c0_10 = arith.constant 0 : index
    %14 = vector.load %arg2[%c2, %c0_9, %c0_10] : memref<3x32x16xbf16, #tpu.memory_space<vmem>>, vector<1x32x16xbf16>
    %15 = vector.shape_cast %14 : vector<1x32x16xbf16> to vector<32x16xbf16>
    %cst_11 = arith.constant dense<0.000000e+00> : vector<8x16xf32>
    %16 = tpu.matmul %13, %15, %cst_11 {dimension_numbers = #tpu.dot_dimension_numbers<[1], [0], [0], [1], [0, 0, 1, 1], [], []>} : vector<8x32xbf16>, vector<32x16xbf16>, vector<8x16xf32> -> vector<8x16xf32>
    %17 = arith.addf %12, %16 : vector<8x16xf32>
    %c0_12 = arith.constant 0 : index
    %c0_13 = arith.constant 0 : index
    %c0_14 = arith.constant 0 : index
    %18 = vector.load %arg3[%c0_12, %c0_13, %c0_14] : memref<1x8x16xf32, #tpu.memory_space<vmem>>, vector<1x8x16xf32>
    %19 = vector.shape_cast %18 : vector<1x8x16xf32> to vector<8x16xf32>
    %20 = vector.shape_cast %17 : vector<8x16xf32> to vector<1x8x16xf32>
    tpu.vector_store %arg3[%c0_12, %c0_13, %c0_14], %20 {strides = array<i32>} : memref<1x8x16xf32, #tpu.memory_space<vmem>>, vector<1x8x16xf32>,
    return
  }
  func.func @transform_0(%arg0: i32) -> (i32, i32, i32) {
    %c0_i32 = arith.constant 0 : i32
    %c0_i32_0 = arith.constant 0 : i32
    %c0_i32_1 = arith.constant 0 : i32
    return %arg0, %c0_i32, %c0_i32_0 : i32, i32, i32
  }
  func.func @transform_1(%arg0: i32) -> (i32, i32, i32) {
    %c0_i32 = arith.constant 0 : i32
    %c0_i32_0 = arith.constant 0 : i32
    %c0_i32_1 = arith.constant 0 : i32
    %c0_i32_2 = arith.constant 0 : i32
    return %c0_i32, %c0_i32_0, %c0_i32_1 : i32, i32, i32
  }
  func.func @transform_2(%arg0: i32) -> (i32, i32, i32) {
    %c0_i32 = arith.constant 0 : i32
    %c0_i32_0 = arith.constant 0 : i32
    %c0_i32_1 = arith.constant 0 : i32
    return %arg0, %c0_i32, %c0_i32_0 : i32, i32, i32
  }
}

module attributes {stable_mosaic.version = 11 : i64} {
  func.func @_conv1d_kernel(%arg0: i32, %arg1: memref<1x10x16xbf16, #tpu.memory_space<vmem>>, %arg2: memref<3x16x8xbf16, #tpu.memory_space<vmem>>, %arg3: memref<1x8x8xf32, #tpu.memory_space<vmem>>) attributes {dimension_semantics = [#tpu.dimension_semantics<parallel>], iteration_bounds = array<i64: 2>, scalar_prefetch = 0 : i64, scratch_operands = 0 : i64, tpu.core_type = #tpu.core_type<tc>, window_params = [{transform_indices = @transform_0, window_bounds = array<i64: 1, 10, 16>}, {pipeline_mode = #tpu.pipeline_mode<synchronous>, transform_indices = @transform_1, window_bounds = array<i64: 3, 16, 8>}, {transform_indices = @transform_2, window_bounds = array<i64: 1, 8, 8>}]} {
    %c0 = arith.constant 0 : index
    %c0_0 = arith.constant 0 : index
    %c0_1 = arith.constant 0 : index
    %0 = vector.load %arg1[%c0, %c0_0, %c0_1] : memref<1x10x16xbf16, #tpu.memory_space<vmem>>, vector<1x10x16xbf16>
    %1 = vector.shape_cast %0 : vector<1x10x16xbf16> to vector<10x16xbf16>
    %cst = arith.constant 0.000000e+00 : f32
    %2 = vector.broadcast %cst : f32 to vector<8x8xf32>
    %3 = vector.extract_strided_slice %1 {offsets = [0, 0], sizes = [8, 16], strides = [1, 1]} : vector<10x16xbf16> to vector<8x16xbf16>
    %c0_2 = arith.constant 0 : index
    %c0_3 = arith.constant 0 : index
    %c0_4 = arith.constant 0 : index
    %4 = vector.load %arg2[%c0_2, %c0_3, %c0_4] : memref<3x16x8xbf16, #tpu.memory_space<vmem>>, vector<1x16x8xbf16>
    %5 = vector.shape_cast %4 : vector<1x16x8xbf16> to vector<16x8xbf16>
    %cst_5 = arith.constant dense<0.000000e+00> : vector<8x8xf32>
    %6 = tpu.matmul %3, %5, %cst_5 {dimension_numbers = #tpu.dot_dimension_numbers<[1], [0], [0], [1], [0, 0, 1, 1], [], []>} : vector<8x16xbf16>, vector<16x8xbf16>, vector<8x8xf32> -> vector<8x8xf32>
    %7 = arith.addf %2, %6 : vector<8x8xf32>
    %8 = vector.extract_strided_slice %1 {offsets = [1, 0], sizes = [8, 16], strides = [1, 1]} : vector<10x16xbf16> to vector<8x16xbf16>
    %c1 = arith.constant 1 : index
    %c0_6 = arith.constant 0 : index
    %c0_7 = arith.constant 0 : index
    %9 = vector.load %arg2[%c1, %c0_6, %c0_7] : memref<3x16x8xbf16, #tpu.memory_space<vmem>>, vector<1x16x8xbf16>
    %10 = vector.shape_cast %9 : vector<1x16x8xbf16> to vector<16x8xbf16>
    %cst_8 = arith.constant dense<0.000000e+00> : vector<8x8xf32>
    %11 = tpu.matmul %8, %10, %cst_8 {dimension_numbers = #tpu.dot_dimension_numbers<[1], [0], [0], [1], [0, 0, 1, 1], [], []>} : vector<8x16xbf16>, vector<16x8xbf16>, vector<8x8xf32> -> vector<8x8xf32>
    %12 = arith.addf %7, %11 : vector<8x8xf32>
    %13 = vector.extract_strided_slice %1 {offsets = [2, 0], sizes = [8, 16], strides = [1, 1]} : vector<10x16xbf16> to vector<8x16xbf16>
    %c2 = arith.constant 2 : index
    %c0_9 = arith.constant 0 : index
    %c0_10 = arith.constant 0 : index
    %14 = vector.load %arg2[%c2, %c0_9, %c0_10] : memref<3x16x8xbf16, #tpu.memory_space<vmem>>, vector<1x16x8xbf16>
    %15 = vector.shape_cast %14 : vector<1x16x8xbf16> to vector<16x8xbf16>
    %cst_11 = arith.constant dense<0.000000e+00> : vector<8x8xf32>
    %16 = tpu.matmul %13, %15, %cst_11 {dimension_numbers = #tpu.dot_dimension_numbers<[1], [0], [0], [1], [0, 0, 1, 1], [], []>} : vector<8x16xbf16>, vector<16x8xbf16>, vector<8x8xf32> -> vector<8x8xf32>
    %17 = arith.addf %12, %16 : vector<8x8xf32>
    %c0_12 = arith.constant 0 : index
    %c0_13 = arith.constant 0 : index
    %c0_14 = arith.constant 0 : index
    %18 = vector.load %arg3[%c0_12, %c0_13, %c0_14] : memref<1x8x8xf32, #tpu.memory_space<vmem>>, vector<1x8x8xf32>
    %19 = vector.shape_cast %18 : vector<1x8x8xf32> to vector<8x8xf32>
    %20 = vector.shape_cast %17 : vector<8x8xf32> to vector<1x8x8xf32>
    tpu.vector_store %arg3[%c0_12, %c0_13, %c0_14], %20 {strides = array<i32>} : memref<1x8x8xf32, #tpu.memory_space<vmem>>, vector<1x8x8xf32>,
    return
  }
  func.func @transform_0(%arg0: i32) -> (i32, i32, i32) {
    %c0_i32 = arith.constant 0 : i32
    %c0_i32_0 = arith.constant 0 : i32
    %c0_i32_1 = arith.constant 0 : i32
    return %arg0, %c0_i32, %c0_i32_0 : i32, i32, i32
  }
  func.func @transform_1(%arg0: i32) -> (i32, i32, i32) {
    %c0_i32 = arith.constant 0 : i32
    %c0_i32_0 = arith.constant 0 : i32
    %c0_i32_1 = arith.constant 0 : i32
    %c0_i32_2 = arith.constant 0 : i32
    return %c0_i32, %c0_i32_0, %c0_i32_1 : i32, i32, i32
  }
  func.func @transform_2(%arg0: i32) -> (i32, i32, i32) {
    %c0_i32 = arith.constant 0 : i32
    %c0_i32_0 = arith.constant 0 : i32
    %c0_i32_1 = arith.constant 0 : i32
    return %arg0, %c0_i32, %c0_i32_0 : i32, i32, i32
  }
}

module attributes {stable_mosaic.version = 11 : i64} {
  func.func @_final_ln_kernel(%arg0: memref<2x32xf32, #tpu.memory_space<vmem>>, %arg1: memref<1x32xf32, #tpu.memory_space<vmem>>, %arg2: memref<1x32xf32, #tpu.memory_space<vmem>>, %arg3: memref<2x32xf32, #tpu.memory_space<vmem>>) attributes {dimension_semantics = [], scalar_prefetch = 0 : i64, scratch_operands = 0 : i64, tpu.core_type = #tpu.core_type<tc>} {
    %c0 = arith.constant 0 : index
    %c0_0 = arith.constant 0 : index
    %0 = vector.load %arg0[%c0, %c0_0] : memref<2x32xf32, #tpu.memory_space<vmem>>, vector<2x32xf32>
    %cst = arith.constant dense<0.000000e+00> : vector<2xf32>
    %1 = vector.multi_reduction <add>, %0, %cst [1] : vector<2x32xf32> to vector<2xf32>
    %2 = vector.shape_cast %1 : vector<2xf32> to vector<2x1xf32>
    %cst_1 = arith.constant 3.200000e+01 : f32
    %3 = vector.broadcast %cst_1 : f32 to vector<2x1xf32>
    %4 = arith.divf %2, %3 : vector<2x1xf32>
    %5 = vector.broadcast %4 : vector<2x1xf32> to vector<2x32xf32>
    %6 = arith.subf %0, %5 : vector<2x32xf32>
    %7 = arith.mulf %6, %6 : vector<2x32xf32>
    %cst_2 = arith.constant dense<0.000000e+00> : vector<2xf32>
    %8 = vector.multi_reduction <add>, %7, %cst_2 [1] : vector<2x32xf32> to vector<2xf32>
    %9 = vector.shape_cast %8 : vector<2xf32> to vector<2x1xf32>
    %cst_3 = arith.constant 3.200000e+01 : f32
    %10 = vector.broadcast %cst_3 : f32 to vector<2x1xf32>
    %11 = arith.divf %9, %10 : vector<2x1xf32>
    %12 = vector.broadcast %4 : vector<2x1xf32> to vector<2x32xf32>
    %13 = arith.subf %0, %12 : vector<2x32xf32>
    %cst_4 = arith.constant 9.99999974E-6 : f32
    %14 = vector.broadcast %cst_4 : f32 to vector<2x1xf32>
    %15 = arith.addf %11, %14 : vector<2x1xf32>
    %16 = math.rsqrt %15 : vector<2x1xf32>
    %17 = vector.broadcast %16 : vector<2x1xf32> to vector<2x32xf32>
    %18 = arith.mulf %13, %17 : vector<2x32xf32>
    %c0_5 = arith.constant 0 : index
    %c0_6 = arith.constant 0 : index
    %19 = vector.load %arg1[%c0_5, %c0_6] : memref<1x32xf32, #tpu.memory_space<vmem>>, vector<1x32xf32>
    %20 = vector.broadcast %19 : vector<1x32xf32> to vector<2x32xf32>
    %21 = arith.mulf %18, %20 : vector<2x32xf32>
    %c0_7 = arith.constant 0 : index
    %c0_8 = arith.constant 0 : index
    %22 = vector.load %arg2[%c0_7, %c0_8] : memref<1x32xf32, #tpu.memory_space<vmem>>, vector<1x32xf32>
    %23 = vector.broadcast %22 : vector<1x32xf32> to vector<2x32xf32>
    %24 = arith.addf %21, %23 : vector<2x32xf32>
    %c0_9 = arith.constant 0 : index
    %c0_10 = arith.constant 0 : index
    %25 = vector.load %arg3[%c0_9, %c0_10] : memref<2x32xf32, #tpu.memory_space<vmem>>, vector<2x32xf32>
    tpu.vector_store %arg3[%c0_9, %c0_10], %24 {strides = array<i32>} : memref<2x32xf32, #tpu.memory_space<vmem>>, vector<2x32xf32>,
    return
  }
}

</mosaic_0001>

<llo_original>
// kernel: transformer_based_forward.11
$region0: #{transformer_based_forward.11}
  #allocation0 [shape = 'u32[]', space=smem, size = 0x4, offset = 0x4, fixed_abs, tag = 'smem constant byte address 0x4 - core index']
  #allocation1 [shape = 'u32[144,128]{1,0:T(1,128)}', space=vmem, size = 0x12000, scoped, tag = 'internal scratch']
  %s0 = inlined_call_operand.vmem [shape: f32[2,32], index: 0, kind: input, shape index: {}]
  %s1 = inlined_call_operand.vmem [shape: f32[1,32], index: 1, kind: input, shape index: {}]
  %s2 = inlined_call_operand.vmem [shape: f32[1,32], index: 2, kind: input, shape index: {}]
  %s3 = inlined_call_operand.hbm [shape: f32[2,32], index: 3, kind: output, shape index: {}]
  %s4 = sld [smem:[#allocation0]]
  $region22: #{transformer_based_forward.11} parent=0
    _
  %s6 = ssub.s32 1, %s4
  %s7 = scalar_select 0, %s6, %s4
  $region1: #{transformer_based_forward.11} parent=0
    #allocation2 [shape = 'u8[1024]{0}', space=vmem, size = 0x400, scoped, tag = 'output window, operand 0, single buffered']
    #allocation3 [shape = 's32[1]{0}', space=sflag, size = 0x4, scoped, tag = 'scoped memory for transformer_based_forward.11']
    %8 = vsyncpa [#allocation3], 0
    // Predicated region
    $region2: #{transformer_based_forward.11} parent=1 // pred_check
      _
    $region3: #{transformer_based_forward.11} parent=1 // pred_check_branch
      %10 = sbr.rel (0) target = $region5
    $region4: #{transformer_based_forward.11} parent=1 // pred_region
      _
    $region5: #{transformer_based_forward.11} parent=1 // pred_fallthru
      _
    // Predicated region
    $region6: #{transformer_based_forward.11} parent=1 // pred_check
      _
    $region7: #{transformer_based_forward.11} parent=1 // pred_check_branch
      %12 = sbr.rel (0) target = $region9
    $region8: #{transformer_based_forward.11} parent=1 // pred_region
      _
    $region9: #{transformer_based_forward.11} parent=1 // pred_fallthru
      _
    // Predicated region
    $region10: #{transformer_based_forward.11} parent=1 // pred_check
      _
    $region11: #{transformer_based_forward.11} parent=1 // pred_check_branch
      %14 = sbr.rel (0) target = $region13
    $region12: #{transformer_based_forward.11} parent=1 // pred_region
      _
    $region13: #{transformer_based_forward.11} parent=1 // pred_fallthru
      _
    %v15 = vld [vmem:[%s0] sm:$0x3]
    %vm16 = vcmask 254976
    %v17 = vsel %vm16, %v15, 0.0
    %18 = vadd.xlane.f32.xlu0 %v17
    %v19 = vpop.xlane.xlu0 %18
    %v20 = vrcp.pop 32.0
    %v21 = vmul.f32 %v19, %v20
    %v22 = vsub.f32 %v15, %v21
    %v23 = vmul.f32 %v22, %v22
    %v24 = vsel %vm16, %v23, 0.0
    %25 = vadd.xlane.f32.xlu0 %v24
    %v26 = vpop.xlane.xlu0 %25
    %v27 = vmul.f32 %v26, %v20
    %v28 = vadd.f32 %v27, 1e-05
    %v29 = vrsqrt.pop %v28
    %v30 = vmul.f32 %v22, %v29
    %v31 = vld [vmem:[%s1] sm:$0x1]
    %v33 = vlaneseq
    %v34 = vshrl.u32 %v33, 7
    %v35 = vsub.s32 0, %v34
    %v36 = vrot.slane %v31, %v35
    %v38 = vmul.f32 %v30, %v36
    %v39 = vld [vmem:[%s2] sm:$0x1]
    %v41 = vlaneseq
    %v42 = vshrl.u32 %v41, 7
    %v43 = vsub.s32 0, %v42
    %v44 = vrot.slane %v39, %v43
    %v46 = vadd.f32 %v38, %v44
    %47 = vst.msk [vmem:[#allocation2] sm:$0x3] %vm16, %v46
    // Predicated region
    $region14: #{transformer_based_forward.11} parent=1 // pred_check
      _
    $region15: #{transformer_based_forward.11} parent=1 // pred_check_branch
      %49 = sbr.rel (0) target = $region17
    $region16: #{transformer_based_forward.11} parent=1 // pred_region
      %s51 = ssub.s32 32, 32
      %52 = vsyncadd [#allocation3], %s51
      %s54 = sshll.u32 [#allocation2], 4
      %s55 = int_to_ptr.vmem [resolvable:$true] %s54
      %57 = dma.vmem_to_hbm [thread:$0]  %s55, 32, %s3, [#allocation3]
    $region17: #{transformer_based_forward.11} parent=1 // pred_fallthru
      _
    // Predicated region
    $region18: #{transformer_based_forward.11} parent=1 // pred_check
      _
    $region19: #{transformer_based_forward.11} parent=1 // pred_check_branch
      %59 = sbr.rel (0) target = $region21
    $region20: #{transformer_based_forward.11} parent=1 // pred_region
      %60 = dma.done [#allocation3], 32
    $region21: #{transformer_based_forward.11} parent=1 // pred_fallthru
      _
    %61 = vsyncpa [#allocation3], 1

// kernel: transformer_based_forward.7
$region0: #{transformer_based_forward.7}
  #allocation0 [shape = 'u32[]', space=smem, size = 0x4, offset = 0x4, fixed_abs, tag = 'smem constant byte address 0x4 - core index']
  #allocation1 [shape = 'u32[144,128]{1,0:T(1,128)}', space=vmem, size = 0x12000, scoped, tag = 'internal scratch']
  %s0 = inlined_call_operand.vmem [shape: bf16[2,10,16], index: 0, kind: input, shape index: {}]
  %s1 = inlined_call_operand.vmem [shape: bf16[3,16,8], index: 1, kind: input, shape index: {}]
  %s2 = inlined_call_operand.vmem [shape: f32[2,8,8], index: 2, kind: output, shape index: {}]
  %s3 = sld [smem:[#allocation0]]
  $region41: #{transformer_based_forward.7} parent=0
    _
  %s5 = ssub.s32 1, %s3
  %s6 = scalar_select 0, %s5, %s3
  loop: start=0, step=1, limit=4
  $region2: #{transformer_based_forward.7} parent=0 // loop_pre_header
    _
  $region3: #{transformer_based_forward.7} parent=0 // loop_header
    %s8 = sphi 0, %s12
    %p9 = scmp.ge.s32.totalorder %s8, 4
    %s18 = sphi 0, %s20
    %s21 = sphi 0, %s18
    %s22 = sphi 0, %s21
    %s38 = sphi 0, %s22
    %s42 = sphi 0, %s42
    %s44 = sphi 0, %s42
    %s45 = sphi 0, %s44
    %s59 = sphi 0, %s45
    %s65 = sphi 0, %s67
    %s68 = sphi 0, %s65
    %s69 = sphi 0, %s68
    %s85 = sphi 0, %s69
  $region4: #{transformer_based_forward.7} parent=0 // loop_header_branch
    %11 = sbr.rel (%p9) target = $region8
  $region5: #{transformer_based_forward.7} parent=0 // loop_body
    %s13 = ssub.s32 %s8, 1
    %s14 = ssub.s32 %s8, 2
    %s15 = sadd.s32 %s8, 1
    %s16 = ssub.s32 %s8, %s15
    %p17 = scmp.eq.s32.totalorder %s16, 0
    %s19 = sadd.s32 %s18, 1
    %s20 = scalar_select %p17, %s18, %s19
    %p23 = pneg %p17
    %p24 = scmp.eq.s32.totalorder %s8, 1
    %p25 = por %p23, %p24
    %p26 = scmp.ne.s32.totalorder %s18, %s21
    %p27 = scmp.eq.s32.totalorder %s8, 0
    %p28 = por %p26, %p27
    %p29 = scmp.ne.s32.totalorder %s18, %s21
    %p30 = scmp.eq.s32.totalorder %s13, 1
    %p31 = por %p29, %p30
    %p32 = scmp.ne.s32.totalorder %s21, %s22
    %p33 = scmp.eq.s32.totalorder %s13, 0
    %p34 = por %p32, %p33
    %p35 = scmp.ne.s32.totalorder %s21, %s22
    %p36 = scmp.eq.s32.totalorder %s14, 1
    %p37 = por %p35, %p36
    %p39 = scmp.ne.s32.totalorder %s22, %s38
    %p40 = scmp.eq.s32.totalorder %s14, 0
    %p41 = por %p39, %p40
    %s43 = sadd.s32 %s42, 1
    %p46 = scmp.eq.s32.totalorder %s8, 1
    %p47 = scmp.ne.s32.totalorder %s42, %s44
    %p48 = scmp.eq.s32.totalorder %s8, 0
    %p49 = por %p47, %p48
    %p50 = scmp.ne.s32.totalorder %s42, %s44
    %p51 = scmp.eq.s32.totalorder %s13, 1
    %p52 = por %p50, %p51
    %p53 = scmp.ne.s32.totalorder %s44, %s45
    %p54 = scmp.eq.s32.totalorder %s13, 0
    %p55 = por %p53, %p54
    %p56 = scmp.ne.s32.totalorder %s44, %s45
    %p57 = scmp.eq.s32.totalorder %s14, 1
    %p58 = por %p56, %p57
    %p60 = scmp.ne.s32.totalorder %s45, %s59
    %p61 = scmp.eq.s32.totalorder %s14, 0
    %p62 = por %p60, %p61
    %s63 = ssub.s32 %s8, %s15
    %p64 = scmp.eq.s32.totalorder %s63, 0
    %s66 = sadd.s32 %s65, 1
    %s67 = scalar_select %p64, %s65, %s66
    %p70 = pneg %p64
    %p71 = scmp.eq.s32.totalorder %s8, 1
    %p72 = por %p70, %p71
    %p73 = scmp.ne.s32.totalorder %s65, %s68
    %p74 = scmp.eq.s32.totalorder %s8, 0
    %p75 = por %p73, %p74
    %p76 = scmp.ne.s32.totalorder %s65, %s68
    %p77 = scmp.eq.s32.totalorder %s13, 1
    %p78 = por %p76, %p77
    %p79 = scmp.ne.s32.totalorder %s68, %s69
    %p80 = scmp.eq.s32.totalorder %s13, 0
    %p81 = por %p79, %p80
    %p82 = scmp.ne.s32.totalorder %s68, %s69
    %p83 = scmp.eq.s32.totalorder %s14, 1
    %p84 = por %p82, %p83
    %p86 = scmp.ne.s32.totalorder %s69, %s85
    %p87 = scmp.eq.s32.totalorder %s14, 0
    %p88 = por %p86, %p87
    %p89 = scmp.le.s32.totalorder 1, %s8
    %p90 = scmp.lt.s32.totalorder %s8, 3
    %p91 = pnand %p89, %p90
    %p92 = pneg %p91
    // Predicated region
    $region9: #{transformer_based_forward.7} parent=5 // pred_check
      _
    $region10: #{transformer_based_forward.7} parent=5 // pred_check_branch
      %94 = sbr.rel (%p91) target = $region12
    $region11: #{transformer_based_forward.7} parent=5 // pred_region
      %s95 = ssub.s32 %s8, 1
      // Predicated region
      $region13: #{transformer_based_forward.7} parent=11 // pred_check
        %p96 = pneg %p55
      $region14: #{transformer_based_forward.7} parent=11 // pred_check_branch
        %98 = sbr.rel (%p96) target = $region16
      $region15: #{transformer_based_forward.7} parent=11 // pred_region
        _
      $region16: #{transformer_based_forward.7} parent=11 // pred_fallthru
        _
    $region12: #{transformer_based_forward.7} parent=5 // pred_fallthru
      _
    %p99 = scmp.lt.s32.totalorder %s8, 2
    // Predicated region
    $region17: #{transformer_based_forward.7} parent=5 // pred_check
      %p100 = pneg %p99
    $region18: #{transformer_based_forward.7} parent=5 // pred_check_branch
      %102 = sbr.rel (%p100) target = $region20
    $region19: #{transformer_based_forward.7} parent=5 // pred_region
      // Predicated region
      $region21: #{transformer_based_forward.7} parent=19 // pred_check
        %p103 = pneg %p28
      $region22: #{transformer_based_forward.7} parent=19 // pred_check_branch
        %105 = sbr.rel (%p103) target = $region24
      $region23: #{transformer_based_forward.7} parent=19 // pred_region
        %p106 = scmp.lt.s32.totalorder %s8, 1
        %s107 = scalar_select %p106, %s8, 1
        %s108 = smul.addr %s107, 2
        %s109 = smul.addr %s108, 4
        %s110 = scalar_lea.vmem %s0, %s109
      $region24: #{transformer_based_forward.7} parent=19 // pred_fallthru
        _
    $region20: #{transformer_based_forward.7} parent=5 // pred_fallthru
      _
    %p111 = scmp.le.s32.totalorder 1, %s8
    %p112 = scmp.lt.s32.totalorder %s8, 3
    %p113 = pnand %p111, %p112
    %p114 = pneg %p113
    // Predicated region
    $region25: #{transformer_based_forward.7} parent=5 // pred_check
      _
    $region26: #{transformer_based_forward.7} parent=5 // pred_check_branch
      %116 = sbr.rel (%p113) target = $region28
    $region27: #{transformer_based_forward.7} parent=5 // pred_region
      %s117 = ssub.s32 %s8, 1
      %p118 = scmp.lt.s32.totalorder %s13, 1
      %s119 = scalar_select %p118, %s13, 1
      %s120 = smul.addr %s119, 2
      %s121 = smul.addr %s120, 4
      %s122 = scalar_lea.vmem %s0, %s121
      %p123 = pneg %p34
      %p124 = pneg %p31
      %p125 = pneg %p55
      %p126 = pneg %p52
      %p127 = pneg %p81
      %p128 = pneg %p78
      %p129 = scmp.lt.s32.totalorder %s13, 1
      %s130 = scalar_select %p129, %s13, 1
      %s131 = smul.addr %s130, 8
      %s132 = scalar_lea.vmem %s2, %s131
      %p133 = scmp.lt.s32.totalorder %s13, 1
      %s134 = scalar_select %p133, %s13, 1
      %s135 = smul.addr %s134, 2
      %s136 = smul.addr %s135, 4
      %s137 = scalar_lea.vmem %s0, %s136
      %p138 = scmp.lt.s32.totalorder %s13, 1
      %s139 = scalar_select %p138, %s13, 1
      %s140 = smul.addr %s139, 8
      %s141 = scalar_lea.vmem %s2, %s140
      %v143 = vld [vmem:[%s137] sm:$0xf]
      %v144 = vld [vmem:[%s137 + $0x4] sm:$0x1]
      %v145 = vld [vmem:[%s1] sm:$0xf]
      %v146 = vld [vmem:[%s1 + $0x4] sm:$0xf]
      %s147 = scalar_lea.vmem %s1, 8
      %v148 = vld [vmem:[%s147] sm:$0xf]
      %v149 = vld [vmem:[%s147 + $0x4] sm:$0xf]
      %v152 = vunpack.c.l.b16 %v143
      %v153 = vunpack.c.l.b16 %v144
      %v154 = vpack.c.b16 %v153, %v152
      %v156 = vshrl.u32 %v154, 16
      %v158 = vshll.u32 %v154, 16
      %v160 = vrot.slane %v158, 1
      %v161 = vor.u32 %v156, %v160
      %v164 = vunpack.c.l.b16 %v148
      %v165 = vunpack.c.l.b16 %v149
      %v166 = vpack.c.b16 %v165, %v164
      %vm168 = vcmask 130048
      %v170 = vsel %vm168, %v161, 0
      %172 = vmatprep.subr.bf16.mxu0 0
      %173 = vmatpush1.bf16.msra.mxu0 %v166
      %174 = vmatprep.subr.bf16.mxu0 0
      %175 = vmatpush1.bf16.msra.mxu0 0
      %176 = vmatprep.subr.bf16.mxu0 0
      %177 = vmatpush1.bf16.msra.mxu0 0
      %178 = vmatprep.subr.bf16.mxu0 0
      %179 = vmatpush1.bf16.msra.mxu0 0
      %180 = vmatprep.subr.bf16.mxu0 0
      %181 = vmatpush1.bf16.msra.mxu0 0
      %182 = vmatprep.subr.bf16.mxu0 0
      %183 = vmatpush1.bf16.msra.mxu0 0
      %184 = vmatprep.subr.bf16.mxu0 0
      %185 = vmatpush1.bf16.msra.mxu0 0
      %186 = vmatprep.subr.bf16.mxu0 0
      %187 = vmatpush1.bf16.msra.mxu0 0
      %188 = vmatprep.subr.bf16.mxu0 0
      %189 = vmatpush1.bf16.msra.mxu0 0
      %190 = vmatprep.subr.bf16.mxu0 0
      %191 = vmatpush1.bf16.msra.mxu0 0
      %192 = vmatprep.subr.bf16.mxu0 0
      %193 = vmatpush1.bf16.msra.mxu0 0
      %194 = vmatprep.subr.bf16.mxu0 0
      %195 = vmatpush1.bf16.msra.mxu0 0
      %196 = vmatprep.subr.bf16.mxu0 0
      %197 = vmatpush1.bf16.msra.mxu0 0
      %198 = vmatprep.subr.bf16.mxu0 0
      %199 = vmatpush1.bf16.msra.mxu0 0
      %200 = vmatprep.subr.bf16.mxu0 0
      %201 = vmatpush1.bf16.msra.mxu0 0
      %202 = vmatprep.subr.bf16.mxu0 0
      %203 = vmatpush1.bf16.msra.mxu0 0
      %204 = vmatprep.mubr.bf16.mxu0 0
      %205 = vmatmul.mubr.bf16.gmra.mrb[0].mxu0 %v170
      %v206 = vpop.f32.mrb[0].mxu0
      %v207 = vadd.f32 0.0, %v206
      %v208 = vpop.f32.mrb[0].mxu0
      %v209 = vpop.f32.mrb[0].mxu0
      %v210 = vpop.f32.mrb[0].mxu0
      %211 = vdwg.mxu0
      %v214 = vunpack.c.l.b16 %v145
      %v215 = vunpack.c.l.b16 %v146
      %v216 = vpack.c.b16 %v215, %v214
      %v219 = vsel %vm168, %v143, 0
      %221 = vmatprep.subr.bf16.mxu0 0
      %222 = vmatpush1.bf16.msra.mxu0 %v216
      %223 = vmatprep.subr.bf16.mxu0 0
      %224 = vmatpush1.bf16.msra.mxu0 0
      %225 = vmatprep.subr.bf16.mxu0 0
      %226 = vmatpush1.bf16.msra.mxu0 0
      %227 = vmatprep.subr.bf16.mxu0 0
      %228 = vmatpush1.bf16.msra.mxu0 0
      %229 = vmatprep.subr.bf16.mxu0 0
      %230 = vmatpush1.bf16.msra.mxu0 0
      %231 = vmatprep.subr.bf16.mxu0 0
      %232 = vmatpush1.bf16.msra.mxu0 0
      %233 = vmatprep.subr.bf16.mxu0 0
      %234 = vmatpush1.bf16.msra.mxu0 0
      %235 = vmatprep.subr.bf16.mxu0 0
      %236 = vmatpush1.bf16.msra.mxu0 0
      %237 = vmatprep.subr.bf16.mxu0 0
      %238 = vmatpush1.bf16.msra.mxu0 0
      %239 = vmatprep.subr.bf16.mxu0 0
      %240 = vmatpush1.bf16.msra.mxu0 0
      %241 = vmatprep.subr.bf16.mxu0 0
      %242 = vmatpush1.bf16.msra.mxu0 0
      %243 = vmatprep.subr.bf16.mxu0 0
      %244 = vmatpush1.bf16.msra.mxu0 0
      %245 = vmatprep.subr.bf16.mxu0 0
      %246 = vmatpush1.bf16.msra.mxu0 0
      %247 = vmatprep.subr.bf16.mxu0 0
      %248 = vmatpush1.bf16.msra.mxu0 0
      %249 = vmatprep.subr.bf16.mxu0 0
      %250 = vmatpush1.bf16.msra.mxu0 0
      %251 = vmatprep.subr.bf16.mxu0 0
      %252 = vmatpush1.bf16.msra.mxu0 0
      %253 = vmatprep.mubr.bf16.mxu0 0
      %254 = vmatmul.mubr.bf16.gmra.mrb[0].mxu0 %v219
      %v255 = vpop.f32.mrb[0].mxu0
      %v256 = vadd.f32 %v207, %v255
      %v257 = vpop.f32.mrb[0].mxu0
      %v258 = vpop.f32.mrb[0].mxu0
      %v259 = vpop.f32.mrb[0].mxu0
      %260 = vdwg.mxu0
      %s261 = scalar_lea.vmem %s1, 16
      %v262 = vld [vmem:[%s261] sm:$0xf]
      %v263 = vld [vmem:[%s261 + $0x4] sm:$0xf]
      %v264 = vrot.slane %v154, 1
      %v267 = vunpack.c.l.b16 %v262
      %v268 = vunpack.c.l.b16 %v263
      %v269 = vpack.c.b16 %v268, %v267
      %v272 = vsel %vm168, %v264, 0
      %274 = vmatprep.subr.bf16.mxu0 0
      %275 = vmatpush1.bf16.msra.mxu0 %v269
      %276 = vmatprep.subr.bf16.mxu0 0
      %277 = vmatpush1.bf16.msra.mxu0 0
      %278 = vmatprep.subr.bf16.mxu0 0
      %279 = vmatpush1.bf16.msra.mxu0 0
      %280 = vmatprep.subr.bf16.mxu0 0
      %281 = vmatpush1.bf16.msra.mxu0 0
      %282 = vmatprep.subr.bf16.mxu0 0
      %283 = vmatpush1.bf16.msra.mxu0 0
      %284 = vmatprep.subr.bf16.mxu0 0
      %285 = vmatpush1.bf16.msra.mxu0 0
      %286 = vmatprep.subr.bf16.mxu0 0
      %287 = vmatpush1.bf16.msra.mxu0 0
      %288 = vmatprep.subr.bf16.mxu0 0
      %289 = vmatpush1.bf16.msra.mxu0 0
      %290 = vmatprep.subr.bf16.mxu0 0
      %291 = vmatpush1.bf16.msra.mxu0 0
      %292 = vmatprep.subr.bf16.mxu0 0
      %293 = vmatpush1.bf16.msra.mxu0 0
      %294 = vmatprep.subr.bf16.mxu0 0
      %295 = vmatpush1.bf16.msra.mxu0 0
      %296 = vmatprep.subr.bf16.mxu0 0
      %297 = vmatpush1.bf16.msra.mxu0 0
      %298 = vmatprep.subr.bf16.mxu0 0
      %299 = vmatpush1.bf16.msra.mxu0 0
      %300 = vmatprep.subr.bf16.mxu0 0
      %301 = vmatpush1.bf16.msra.mxu0 0
      %302 = vmatprep.subr.bf16.mxu0 0
      %303 = vmatpush1.bf16.msra.mxu0 0
      %304 = vmatprep.subr.bf16.mxu0 0
      %305 = vmatpush1.bf16.msra.mxu0 0
      %306 = vmatprep.mubr.bf16.mxu0 0
      %307 = vmatmul.mubr.bf16.gmra.mrb[0].mxu0 %v272
      %v308 = vpop.f32.mrb[0].mxu0
      %v309 = vadd.f32 0.0, %v308
      %v310 = vpop.f32.mrb[0].mxu0
      %v311 = vpop.f32.mrb[0].mxu0
      %v312 = vpop.f32.mrb[0].mxu0
      %313 = vdwg.mxu0
      %v314 = vadd.f32 %v256, %v309
      %vm315 = vcmask 64512
      %316 = vst.msk [vmem:[%s141] sm:$0xff] %vm315, %v314
      %p317 = scmp.lt.s32.totalorder %s13, 1
      %s318 = scalar_select %p317, %s13, 1
      %s319 = smul.addr %s318, 8
      %s320 = scalar_lea.vmem %s2, %s319
      // Predicated region
      $region29: #{transformer_based_forward.7} parent=27 // pred_check
        %p321 = pneg %p78
      $region30: #{transformer_based_forward.7} parent=27 // pred_check_branch
        %323 = sbr.rel (%p321) target = $region32
      $region31: #{transformer_based_forward.7} parent=27 // pred_region
        _
      $region32: #{transformer_based_forward.7} parent=27 // pred_fallthru
        _
    $region28: #{transformer_based_forward.7} parent=5 // pred_fallthru
      _
    %p324 = scmp.le.s32.totalorder 2, %s8
    // Predicated region
    $region33: #{transformer_based_forward.7} parent=5 // pred_check
      %p325 = pneg %p324
    $region34: #{transformer_based_forward.7} parent=5 // pred_check_branch
      %327 = sbr.rel (%p325) target = $region36
    $region35: #{transformer_based_forward.7} parent=5 // pred_region
      %s328 = ssub.s32 %s8, 2
      // Predicated region
      $region37: #{transformer_based_forward.7} parent=35 // pred_check
        %p329 = pneg %p84
      $region38: #{transformer_based_forward.7} parent=35 // pred_check_branch
        %331 = sbr.rel (%p329) target = $region40
      $region39: #{transformer_based_forward.7} parent=35 // pred_region
        %p332 = scmp.lt.s32.totalorder %s14, 1
        %s333 = scalar_select %p332, %s14, 1
        %s334 = smul.addr %s333, 8
        %s335 = scalar_lea.vmem %s2, %s334
      $region40: #{transformer_based_forward.7} parent=35 // pred_fallthru
        _
    $region36: #{transformer_based_forward.7} parent=5 // pred_fallthru
      _
  $region6: #{transformer_based_forward.7} parent=0 // loop_footer
    %s12 = sadd.s32 1, %s8
  $region7: #{transformer_based_forward.7} parent=0 // loop_footer_branch
    %7 = sbr.rel target = $region3
  $region8: #{transformer_based_forward.7} parent=0 // loop_exit
    _

// kernel: transformer_based_forward.6
$region0: #{transformer_based_forward.6}
  #allocation0 [shape = 'u32[]', space=smem, size = 0x4, offset = 0x4, fixed_abs, tag = 'smem constant byte address 0x4 - core index']
  #allocation1 [shape = 'u32[144,128]{1,0:T(1,128)}', space=vmem, size = 0x12000, scoped, tag = 'internal scratch']
  %s0 = inlined_call_operand.vmem [shape: bf16[2,10,32], index: 0, kind: input, shape index: {}]
  %s1 = inlined_call_operand.vmem [shape: bf16[3,32,16], index: 1, kind: input, shape index: {}]
  %s2 = inlined_call_operand.vmem [shape: f32[2,8,16], index: 2, kind: output, shape index: {}]
  %s3 = sld [smem:[#allocation0]]
  $region41: #{transformer_based_forward.6} parent=0
    _
  %s5 = ssub.s32 1, %s3
  %s6 = scalar_select 0, %s5, %s3
  loop: start=0, step=1, limit=4
  $region2: #{transformer_based_forward.6} parent=0 // loop_pre_header
    _
  $region3: #{transformer_based_forward.6} parent=0 // loop_header
    %s8 = sphi 0, %s12
    %p9 = scmp.ge.s32.totalorder %s8, 4
    %s18 = sphi 0, %s20
    %s21 = sphi 0, %s18
    %s22 = sphi 0, %s21
    %s38 = sphi 0, %s22
    %s42 = sphi 0, %s42
    %s44 = sphi 0, %s42
    %s45 = sphi 0, %s44
    %s59 = sphi 0, %s45
    %s65 = sphi 0, %s67
    %s68 = sphi 0, %s65
    %s69 = sphi 0, %s68
    %s85 = sphi 0, %s69
  $region4: #{transformer_based_forward.6} parent=0 // loop_header_branch
    %11 = sbr.rel (%p9) target = $region8
  $region5: #{transformer_based_forward.6} parent=0 // loop_body
    %s13 = ssub.s32 %s8, 1
    %s14 = ssub.s32 %s8, 2
    %s15 = sadd.s32 %s8, 1
    %s16 = ssub.s32 %s8, %s15
    %p17 = scmp.eq.s32.totalorder %s16, 0
    %s19 = sadd.s32 %s18, 1
    %s20 = scalar_select %p17, %s18, %s19
    %p23 = pneg %p17
    %p24 = scmp.eq.s32.totalorder %s8, 1
    %p25 = por %p23, %p24
    %p26 = scmp.ne.s32.totalorder %s18, %s21
    %p27 = scmp.eq.s32.totalorder %s8, 0
    %p28 = por %p26, %p27
    %p29 = scmp.ne.s32.totalorder %s18, %s21
    %p30 = scmp.eq.s32.totalorder %s13, 1
    %p31 = por %p29, %p30
    %p32 = scmp.ne.s32.totalorder %s21, %s22
    %p33 = scmp.eq.s32.totalorder %s13, 0
    %p34 = por %p32, %p33
    %p35 = scmp.ne.s32.totalorder %s21, %s22
    %p36 = scmp.eq.s32.totalorder %s14, 1
    %p37 = por %p35, %p36
    %p39 = scmp.ne.s32.totalorder %s22, %s38
    %p40 = scmp.eq.s32.totalorder %s14, 0
    %p41 = por %p39, %p40
    %s43 = sadd.s32 %s42, 1
    %p46 = scmp.eq.s32.totalorder %s8, 1
    %p47 = scmp.ne.s32.totalorder %s42, %s44
    %p48 = scmp.eq.s32.totalorder %s8, 0
    %p49 = por %p47, %p48
    %p50 = scmp.ne.s32.totalorder %s42, %s44
    %p51 = scmp.eq.s32.totalorder %s13, 1
    %p52 = por %p50, %p51
    %p53 = scmp.ne.s32.totalorder %s44, %s45
    %p54 = scmp.eq.s32.totalorder %s13, 0
    %p55 = por %p53, %p54
    %p56 = scmp.ne.s32.totalorder %s44, %s45
    %p57 = scmp.eq.s32.totalorder %s14, 1
    %p58 = por %p56, %p57
    %p60 = scmp.ne.s32.totalorder %s45, %s59
    %p61 = scmp.eq.s32.totalorder %s14, 0
    %p62 = por %p60, %p61
    %s63 = ssub.s32 %s8, %s15
    %p64 = scmp.eq.s32.totalorder %s63, 0
    %s66 = sadd.s32 %s65, 1
    %s67 = scalar_select %p64, %s65, %s66
    %p70 = pneg %p64
    %p71 = scmp.eq.s32.totalorder %s8, 1
    %p72 = por %p70, %p71
    %p73 = scmp.ne.s32.totalorder %s65, %s68
    %p74 = scmp.eq.s32.totalorder %s8, 0
    %p75 = por %p73, %p74
    %p76 = scmp.ne.s32.totalorder %s65, %s68
    %p77 = scmp.eq.s32.totalorder %s13, 1
    %p78 = por %p76, %p77
    %p79 = scmp.ne.s32.totalorder %s68, %s69
    %p80 = scmp.eq.s32.totalorder %s13, 0
    %p81 = por %p79, %p80
    %p82 = scmp.ne.s32.totalorder %s68, %s69
    %p83 = scmp.eq.s32.totalorder %s14, 1
    %p84 = por %p82, %p83
    %p86 = scmp.ne.s32.totalorder %s69, %s85
    %p87 = scmp.eq.s32.totalorder %s14, 0
    %p88 = por %p86, %p87
    %p89 = scmp.le.s32.totalorder 1, %s8
    %p90 = scmp.lt.s32.totalorder %s8, 3
    %p91 = pnand %p89, %p90
    %p92 = pneg %p91
    // Predicated region
    $region9: #{transformer_based_forward.6} parent=5 // pred_check
      _
    $region10: #{transformer_based_forward.6} parent=5 // pred_check_branch
      %94 = sbr.rel (%p91) target = $region12
    $region11: #{transformer_based_forward.6} parent=5 // pred_region
      %s95 = ssub.s32 %s8, 1
      // Predicated region
      $region13: #{transformer_based_forward.6} parent=11 // pred_check
        %p96 = pneg %p55
      $region14: #{transformer_based_forward.6} parent=11 // pred_check_branch
        %98 = sbr.rel (%p96) target = $region16
      $region15: #{transformer_based_forward.6} parent=11 // pred_region
        _
      $region16: #{transformer_based_forward.6} parent=11 // pred_fallthru
        _
    $region12: #{transformer_based_forward.6} parent=5 // pred_fallthru
      _
    %p99 = scmp.lt.s32.totalorder %s8, 2
    // Predicated region
    $region17: #{transformer_based_forward.6} parent=5 // pred_check
      %p100 = pneg %p99
    $region18: #{transformer_based_forward.6} parent=5 // pred_check_branch
      %102 = sbr.rel (%p100) target = $region20
    $region19: #{transformer_based_forward.6} parent=5 // pred_region
      // Predicated region
      $region21: #{transformer_based_forward.6} parent=19 // pred_check
        %p103 = pneg %p28
      $region22: #{transformer_based_forward.6} parent=19 // pred_check_branch
        %105 = sbr.rel (%p103) target = $region24
      $region23: #{transformer_based_forward.6} parent=19 // pred_region
        %p106 = scmp.lt.s32.totalorder %s8, 1
        %s107 = scalar_select %p106, %s8, 1
        %s108 = smul.addr %s107, 2
        %s109 = smul.addr %s108, 4
        %s110 = scalar_lea.vmem %s0, %s109
      $region24: #{transformer_based_forward.6} parent=19 // pred_fallthru
        _
    $region20: #{transformer_based_forward.6} parent=5 // pred_fallthru
      _
    %p111 = scmp.le.s32.totalorder 1, %s8
    %p112 = scmp.lt.s32.totalorder %s8, 3
    %p113 = pnand %p111, %p112
    %p114 = pneg %p113
    // Predicated region
    $region25: #{transformer_based_forward.6} parent=5 // pred_check
      _
    $region26: #{transformer_based_forward.6} parent=5 // pred_check_branch
      %116 = sbr.rel (%p113) target = $region28
    $region27: #{transformer_based_forward.6} parent=5 // pred_region
      %s117 = ssub.s32 %s8, 1
      %p118 = scmp.lt.s32.totalorder %s13, 1
      %s119 = scalar_select %p118, %s13, 1
      %s120 = smul.addr %s119, 2
      %s121 = smul.addr %s120, 4
      %s122 = scalar_lea.vmem %s0, %s121
      %p123 = pneg %p34
      %p124 = pneg %p31
      %p125 = pneg %p55
      %p126 = pneg %p52
      %p127 = pneg %p81
      %p128 = pneg %p78
      %p129 = scmp.lt.s32.totalorder %s13, 1
      %s130 = scalar_select %p129, %s13, 1
      %s131 = smul.addr %s130, 8
      %s132 = scalar_lea.vmem %s2, %s131
      %p133 = scmp.lt.s32.totalorder %s13, 1
      %s134 = scalar_select %p133, %s13, 1
      %s135 = smul.addr %s134, 2
      %s136 = smul.addr %s135, 4
      %s137 = scalar_lea.vmem %s0, %s136
      %p138 = scmp.lt.s32.totalorder %s13, 1
      %s139 = scalar_select %p138, %s13, 1
      %s140 = smul.addr %s139, 8
      %s141 = scalar_lea.vmem %s2, %s140
      %v143 = vld [vmem:[%s137] sm:$0xf]
      %v144 = vld [vmem:[%s137 + $0x4] sm:$0x1]
      %v145 = vld [vmem:[%s1] sm:$0xf]
      %v146 = vld [vmem:[%s1 + $0x4] sm:$0xf]
      %v147 = vld [vmem:[%s1 + $0x8] sm:$0xf]
      %v148 = vld [vmem:[%s1 + $0xc] sm:$0xf]
      %s149 = scalar_lea.vmem %s1, 16
      %v150 = vld [vmem:[%s149] sm:$0xf]
      %v151 = vld [vmem:[%s149 + $0x4] sm:$0xf]
      %v152 = vld [vmem:[%s149 + $0x8] sm:$0xf]
      %v153 = vld [vmem:[%s149 + $0xc] sm:$0xf]
      %v156 = vunpack.c.l.b16 %v143
      %v157 = vunpack.c.l.b16 %v144
      %v158 = vpack.c.b16 %v157, %v156
      %v160 = vshrl.u32 %v158, 16
      %v162 = vshll.u32 %v158, 16
      %v164 = vrot.slane %v162, 1
      %v165 = vor.u32 %v160, %v164
      %v170 = vunpack.c.l.b16 %v150
      %v171 = vunpack.c.l.b16 %v151
      %v172 = vunpack.c.l.b16 %v152
      %v173 = vunpack.c.l.b16 %v153
      %v174 = vpack.c.b16 %v171, %v170
      %v175 = vpack.c.b16 %v173, %v172
      %vm178 = vcmask 261120
      %v180 = vsel %vm178, %v165, 0
      %182 = vmatprep.subr.bf16.mxu0 0
      %183 = vmatpush1.bf16.msra.mxu0 %v174
      %184 = vmatprep.subr.bf16.mxu0 0
      %185 = vmatpush1.bf16.msra.mxu0 %v175
      %186 = vmatprep.subr.bf16.mxu0 0
      %187 = vmatpush1.bf16.msra.mxu0 0
      %188 = vmatprep.subr.bf16.mxu0 0
      %189 = vmatpush1.bf16.msra.mxu0 0
      %190 = vmatprep.subr.bf16.mxu0 0
      %191 = vmatpush1.bf16.msra.mxu0 0
      %192 = vmatprep.subr.bf16.mxu0 0
      %193 = vmatpush1.bf16.msra.mxu0 0
      %194 = vmatprep.subr.bf16.mxu0 0
      %195 = vmatpush1.bf16.msra.mxu0 0
      %196 = vmatprep.subr.bf16.mxu0 0
      %197 = vmatpush1.bf16.msra.mxu0 0
      %198 = vmatprep.subr.bf16.mxu0 0
      %199 = vmatpush1.bf16.msra.mxu0 0
      %200 = vmatprep.subr.bf16.mxu0 0
      %201 = vmatpush1.bf16.msra.mxu0 0
      %202 = vmatprep.subr.bf16.mxu0 0
      %203 = vmatpush1.bf16.msra.mxu0 0
      %204 = vmatprep.subr.bf16.mxu0 0
      %205 = vmatpush1.bf16.msra.mxu0 0
      %206 = vmatprep.subr.bf16.mxu0 0
      %207 = vmatpush1.bf16.msra.mxu0 0
      %208 = vmatprep.subr.bf16.mxu0 0
      %209 = vmatpush1.bf16.msra.mxu0 0
      %210 = vmatprep.subr.bf16.mxu0 0
      %211 = vmatpush1.bf16.msra.mxu0 0
      %212 = vmatprep.subr.bf16.mxu0 0
      %213 = vmatpush1.bf16.msra.mxu0 0
      %214 = vmatprep.mubr.bf16.mxu0 0
      %215 = vmatmul.mubr.bf16.gmra.mrb[0].mxu0 %v180
      %v216 = vpop.f32.mrb[0].mxu0
      %v217 = vadd.f32 0.0, %v216
      %v218 = vpop.f32.mrb[0].mxu0
      %v219 = vpop.f32.mrb[0].mxu0
      %v220 = vpop.f32.mrb[0].mxu0
      %221 = vdwg.mxu0
      %v226 = vunpack.c.l.b16 %v145
      %v227 = vunpack.c.l.b16 %v146
      %v228 = vunpack.c.l.b16 %v147
      %v229 = vunpack.c.l.b16 %v148
      %v230 = vpack.c.b16 %v227, %v226
      %v231 = vpack.c.b16 %v229, %v228
      %v235 = vsel %vm178, %v143, 0
      %237 = vmatprep.subr.bf16.mxu0 0
      %238 = vmatpush1.bf16.msra.mxu0 %v230
      %239 = vmatprep.subr.bf16.mxu0 0
      %240 = vmatpush1.bf16.msra.mxu0 %v231
      %241 = vmatprep.subr.bf16.mxu0 0
      %242 = vmatpush1.bf16.msra.mxu0 0
      %243 = vmatprep.subr.bf16.mxu0 0
      %244 = vmatpush1.bf16.msra.mxu0 0
      %245 = vmatprep.subr.bf16.mxu0 0
      %246 = vmatpush1.bf16.msra.mxu0 0
      %247 = vmatprep.subr.bf16.mxu0 0
      %248 = vmatpush1.bf16.msra.mxu0 0
      %249 = vmatprep.subr.bf16.mxu0 0
      %250 = vmatpush1.bf16.msra.mxu0 0
      %251 = vmatprep.subr.bf16.mxu0 0
      %252 = vmatpush1.bf16.msra.mxu0 0
      %253 = vmatprep.subr.bf16.mxu0 0
      %254 = vmatpush1.bf16.msra.mxu0 0
      %255 = vmatprep.subr.bf16.mxu0 0
      %256 = vmatpush1.bf16.msra.mxu0 0
      %257 = vmatprep.subr.bf16.mxu0 0
      %258 = vmatpush1.bf16.msra.mxu0 0
      %259 = vmatprep.subr.bf16.mxu0 0
      %260 = vmatpush1.bf16.msra.mxu0 0
      %261 = vmatprep.subr.bf16.mxu0 0
      %262 = vmatpush1.bf16.msra.mxu0 0
      %263 = vmatprep.subr.bf16.mxu0 0
      %264 = vmatpush1.bf16.msra.mxu0 0
      %265 = vmatprep.subr.bf16.mxu0 0
      %266 = vmatpush1.bf16.msra.mxu0 0
      %267 = vmatprep.subr.bf16.mxu0 0
      %268 = vmatpush1.bf16.msra.mxu0 0
      %269 = vmatprep.mubr.bf16.mxu0 0
      %270 = vmatmul.mubr.bf16.gmra.mrb[0].mxu0 %v235
      %v271 = vpop.f32.mrb[0].mxu0
      %v272 = vadd.f32 %v217, %v271
      %v273 = vpop.f32.mrb[0].mxu0
      %v274 = vpop.f32.mrb[0].mxu0
      %v275 = vpop.f32.mrb[0].mxu0
      %276 = vdwg.mxu0
      %s277 = scalar_lea.vmem %s1, 32
      %v278 = vld [vmem:[%s277] sm:$0xf]
      %v279 = vld [vmem:[%s277 + $0x4] sm:$0xf]
      %v280 = vld [vmem:[%s277 + $0x8] sm:$0xf]
      %v281 = vld [vmem:[%s277 + $0xc] sm:$0xf]
      %v282 = vrot.slane %v158, 1
      %v287 = vunpack.c.l.b16 %v278
      %v288 = vunpack.c.l.b16 %v279
      %v289 = vunpack.c.l.b16 %v280
      %v290 = vunpack.c.l.b16 %v281
      %v291 = vpack.c.b16 %v288, %v287
      %v292 = vpack.c.b16 %v290, %v289
      %v296 = vsel %vm178, %v282, 0
      %298 = vmatprep.subr.bf16.mxu0 0
      %299 = vmatpush1.bf16.msra.mxu0 %v291
      %300 = vmatprep.subr.bf16.mxu0 0
      %301 = vmatpush1.bf16.msra.mxu0 %v292
      %302 = vmatprep.subr.bf16.mxu0 0
      %303 = vmatpush1.bf16.msra.mxu0 0
      %304 = vmatprep.subr.bf16.mxu0 0
      %305 = vmatpush1.bf16.msra.mxu0 0
      %306 = vmatprep.subr.bf16.mxu0 0
      %307 = vmatpush1.bf16.msra.mxu0 0
      %308 = vmatprep.subr.bf16.mxu0 0
      %309 = vmatpush1.bf16.msra.mxu0 0
      %310 = vmatprep.subr.bf16.mxu0 0
      %311 = vmatpush1.bf16.msra.mxu0 0
      %312 = vmatprep.subr.bf16.mxu0 0
      %313 = vmatpush1.bf16.msra.mxu0 0
      %314 = vmatprep.subr.bf16.mxu0 0
      %315 = vmatpush1.bf16.msra.mxu0 0
      %316 = vmatprep.subr.bf16.mxu0 0
      %317 = vmatpush1.bf16.msra.mxu0 0
      %318 = vmatprep.subr.bf16.mxu0 0
      %319 = vmatpush1.bf16.msra.mxu0 0
      %320 = vmatprep.subr.bf16.mxu0 0
      %321 = vmatpush1.bf16.msra.mxu0 0
      %322 = vmatprep.subr.bf16.mxu0 0
      %323 = vmatpush1.bf16.msra.mxu0 0
      %324 = vmatprep.subr.bf16.mxu0 0
      %325 = vmatpush1.bf16.msra.mxu0 0
      %326 = vmatprep.subr.bf16.mxu0 0
      %327 = vmatpush1.bf16.msra.mxu0 0
      %328 = vmatprep.subr.bf16.mxu0 0
      %329 = vmatpush1.bf16.msra.mxu0 0
      %330 = vmatprep.mubr.bf16.mxu0 0
      %331 = vmatmul.mubr.bf16.gmra.mrb[0].mxu0 %v296
      %v332 = vpop.f32.mrb[0].mxu0
      %v333 = vadd.f32 0.0, %v332
      %v334 = vpop.f32.mrb[0].mxu0
      %v335 = vpop.f32.mrb[0].mxu0
      %v336 = vpop.f32.mrb[0].mxu0
      %337 = vdwg.mxu0
      %v338 = vadd.f32 %v272, %v333
      %vm339 = vcmask 130048
      %340 = vst.msk [vmem:[%s141] sm:$0xff] %vm339, %v338
      %p341 = scmp.lt.s32.totalorder %s13, 1
      %s342 = scalar_select %p341, %s13, 1
      %s343 = smul.addr %s342, 8
      %s344 = scalar_lea.vmem %s2, %s343
      // Predicated region
      $region29: #{transformer_based_forward.6} parent=27 // pred_check
        %p345 = pneg %p78
      $region30: #{transformer_based_forward.6} parent=27 // pred_check_branch
        %347 = sbr.rel (%p345) target = $region32
      $region31: #{transformer_based_forward.6} parent=27 // pred_region
        _
      $region32: #{transformer_based_forward.6} parent=27 // pred_fallthru
        _
    $region28: #{transformer_based_forward.6} parent=5 // pred_fallthru
      _
    %p348 = scmp.le.s32.totalorder 2, %s8
    // Predicated region
    $region33: #{transformer_based_forward.6} parent=5 // pred_check
      %p349 = pneg %p348
    $region34: #{transformer_based_forward.6} parent=5 // pred_check_branch
      %351 = sbr.rel (%p349) target = $region36
    $region35: #{transformer_based_forward.6} parent=5 // pred_region
      %s352 = ssub.s32 %s8, 2
      // Predicated region
      $region37: #{transformer_based_forward.6} parent=35 // pred_check
        %p353 = pneg %p84
      $region38: #{transformer_based_forward.6} parent=35 // pred_check_branch
        %355 = sbr.rel (%p353) target = $region40
      $region39: #{transformer_based_forward.6} parent=35 // pred_region
        %p356 = scmp.lt.s32.totalorder %s14, 1
        %s357 = scalar_select %p356, %s14, 1
        %s358 = smul.addr %s357, 8
        %s359 = scalar_lea.vmem %s2, %s358
      $region40: #{transformer_based_forward.6} parent=35 // pred_fallthru
        _
    $region36: #{transformer_based_forward.6} parent=5 // pred_fallthru
      _
  $region6: #{transformer_based_forward.6} parent=0 // loop_footer
    %s12 = sadd.s32 1, %s8
  $region7: #{transformer_based_forward.6} parent=0 // loop_footer_branch
    %7 = sbr.rel target = $region3
  $region8: #{transformer_based_forward.6} parent=0 // loop_exit
    _

// kernel: transformer_based_forward.9
$region0: #{transformer_based_forward.9}
  #allocation0 [shape = 'u32[]', space=smem, size = 0x4, offset = 0x4, fixed_abs, tag = 'smem constant byte address 0x4 - core index']
  #allocation1 [shape = 'u32[144,128]{1,0:T(1,128)}', space=vmem, size = 0x12000, scoped, tag = 'internal scratch']
  %s0 = inlined_call_operand.vmem [shape: f32[2,8,32], index: 0, kind: input, shape index: {}]
  %s1 = inlined_call_operand.vmem [shape: bf16[32,96], index: 1, kind: input, shape index: {}]
  %s2 = inlined_call_operand.vmem [shape: f32[1,96], index: 2, kind: input, shape index: {}]
  %s3 = inlined_call_operand.vmem [shape: bf16[4,8,32], index: 3, kind: input, shape index: {}]
  %s4 = inlined_call_operand.vmem [shape: f32[1,32], index: 4, kind: input, shape index: {}]
  %s5 = inlined_call_operand.vmem [shape: f32[1,32], index: 5, kind: input, shape index: {}]
  %s6 = inlined_call_operand.vmem [shape: f32[1,32], index: 6, kind: input, shape index: {}]
  %s7 = inlined_call_operand.vmem [shape: f32[1,32], index: 7, kind: input, shape index: {}]
  %s8 = inlined_call_operand.vmem [shape: f32[1,32], index: 8, kind: input, shape index: {}]
  %s9 = inlined_call_operand.vmem [shape: bf16[32,128], index: 9, kind: input, shape index: {}]
  %s10 = inlined_call_operand.vmem [shape: f32[1,128], index: 10, kind: input, shape index: {}]
  %s11 = inlined_call_operand.vmem [shape: bf16[128,32], index: 11, kind: input, shape index: {}]
  %s12 = inlined_call_operand.vmem [shape: f32[1,32], index: 12, kind: input, shape index: {}]
  %s13 = inlined_call_operand.vmem [shape: f32[2,8,32], index: 13, kind: output, shape index: {}]
  %s14 = sld [smem:[#allocation0]]
  $region85: #{transformer_based_forward.9} parent=0
    _
  %s16 = ssub.s32 1, %s14
  %s17 = scalar_select 0, %s16, %s14
  loop: start=0, step=1, limit=4
  $region2: #{transformer_based_forward.9} parent=0 // loop_pre_header
    _
  $region3: #{transformer_based_forward.9} parent=0 // loop_header
    %s19 = sphi 0, %s23
    %p20 = scmp.ge.s32.totalorder %s19, 4
    %s29 = sphi 0, %s31
    %s32 = sphi 0, %s29
    %s33 = sphi 0, %s32
    %s49 = sphi 0, %s33
    %s53 = sphi 0, %s53
    %s55 = sphi 0, %s53
    %s56 = sphi 0, %s55
    %s70 = sphi 0, %s56
    %s74 = sphi 0, %s74
    %s76 = sphi 0, %s74
    %s77 = sphi 0, %s76
    %s91 = sphi 0, %s77
    %s95 = sphi 0, %s95
    %s97 = sphi 0, %s95
    %s98 = sphi 0, %s97
    %s112 = sphi 0, %s98
    %s116 = sphi 0, %s116
    %s118 = sphi 0, %s116
    %s119 = sphi 0, %s118
    %s133 = sphi 0, %s119
    %s137 = sphi 0, %s137
    %s139 = sphi 0, %s137
    %s140 = sphi 0, %s139
    %s154 = sphi 0, %s140
    %s158 = sphi 0, %s158
    %s160 = sphi 0, %s158
    %s161 = sphi 0, %s160
    %s175 = sphi 0, %s161
    %s179 = sphi 0, %s179
    %s181 = sphi 0, %s179
    %s182 = sphi 0, %s181
    %s196 = sphi 0, %s182
    %s200 = sphi 0, %s200
    %s202 = sphi 0, %s200
    %s203 = sphi 0, %s202
    %s217 = sphi 0, %s203
    %s221 = sphi 0, %s221
    %s223 = sphi 0, %s221
    %s224 = sphi 0, %s223
    %s238 = sphi 0, %s224
    %s242 = sphi 0, %s242
    %s244 = sphi 0, %s242
    %s245 = sphi 0, %s244
    %s259 = sphi 0, %s245
    %s263 = sphi 0, %s263
    %s265 = sphi 0, %s263
    %s266 = sphi 0, %s265
    %s280 = sphi 0, %s266
    %s284 = sphi 0, %s284
    %s286 = sphi 0, %s284
    %s287 = sphi 0, %s286
    %s301 = sphi 0, %s287
    %s307 = sphi 0, %s309
    %s310 = sphi 0, %s307
    %s311 = sphi 0, %s310
    %s327 = sphi 0, %s311
  $region4: #{transformer_based_forward.9} parent=0 // loop_header_branch
    %22 = sbr.rel (%p20) target = $region8
  $region5: #{transformer_based_forward.9} parent=0 // loop_body
    %s24 = ssub.s32 %s19, 1
    %s25 = ssub.s32 %s19, 2
    %s26 = sadd.s32 %s19, 1
    %s27 = ssub.s32 %s19, %s26
    %p28 = scmp.eq.s32.totalorder %s27, 0
    %s30 = sadd.s32 %s29, 1
    %s31 = scalar_select %p28, %s29, %s30
    %p34 = pneg %p28
    %p35 = scmp.eq.s32.totalorder %s19, 1
    %p36 = por %p34, %p35
    %p37 = scmp.ne.s32.totalorder %s29, %s32
    %p38 = scmp.eq.s32.totalorder %s19, 0
    %p39 = por %p37, %p38
    %p40 = scmp.ne.s32.totalorder %s29, %s32
    %p41 = scmp.eq.s32.totalorder %s24, 1
    %p42 = por %p40, %p41
    %p43 = scmp.ne.s32.totalorder %s32, %s33
    %p44 = scmp.eq.s32.totalorder %s24, 0
    %p45 = por %p43, %p44
    %p46 = scmp.ne.s32.totalorder %s32, %s33
    %p47 = scmp.eq.s32.totalorder %s25, 1
    %p48 = por %p46, %p47
    %p50 = scmp.ne.s32.totalorder %s33, %s49
    %p51 = scmp.eq.s32.totalorder %s25, 0
    %p52 = por %p50, %p51
    %s54 = sadd.s32 %s53, 1
    %p57 = scmp.eq.s32.totalorder %s19, 1
    %p58 = scmp.ne.s32.totalorder %s53, %s55
    %p59 = scmp.eq.s32.totalorder %s19, 0
    %p60 = por %p58, %p59
    %p61 = scmp.ne.s32.totalorder %s53, %s55
    %p62 = scmp.eq.s32.totalorder %s24, 1
    %p63 = por %p61, %p62
    %p64 = scmp.ne.s32.totalorder %s55, %s56
    %p65 = scmp.eq.s32.totalorder %s24, 0
    %p66 = por %p64, %p65
    %p67 = scmp.ne.s32.totalorder %s55, %s56
    %p68 = scmp.eq.s32.totalorder %s25, 1
    %p69 = por %p67, %p68
    %p71 = scmp.ne.s32.totalorder %s56, %s70
    %p72 = scmp.eq.s32.totalorder %s25, 0
    %p73 = por %p71, %p72
    %s75 = sadd.s32 %s74, 1
    %p78 = scmp.eq.s32.totalorder %s19, 1
    %p79 = scmp.ne.s32.totalorder %s74, %s76
    %p80 = scmp.eq.s32.totalorder %s19, 0
    %p81 = por %p79, %p80
    %p82 = scmp.ne.s32.totalorder %s74, %s76
    %p83 = scmp.eq.s32.totalorder %s24, 1
    %p84 = por %p82, %p83
    %p85 = scmp.ne.s32.totalorder %s76, %s77
    %p86 = scmp.eq.s32.totalorder %s24, 0
    %p87 = por %p85, %p86
    %p88 = scmp.ne.s32.totalorder %s76, %s77
    %p89 = scmp.eq.s32.totalorder %s25, 1
    %p90 = por %p88, %p89
    %p92 = scmp.ne.s32.totalorder %s77, %s91
    %p93 = scmp.eq.s32.totalorder %s25, 0
    %p94 = por %p92, %p93
    %s96 = sadd.s32 %s95, 1
    %p99 = scmp.eq.s32.totalorder %s19, 1
    %p100 = scmp.ne.s32.totalorder %s95, %s97
    %p101 = scmp.eq.s32.totalorder %s19, 0
    %p102 = por %p100, %p101
    %p103 = scmp.ne.s32.totalorder %s95, %s97
    %p104 = scmp.eq.s32.totalorder %s24, 1
    %p105 = por %p103, %p104
    %p106 = scmp.ne.s32.totalorder %s97, %s98
    %p107 = scmp.eq.s32.totalorder %s24, 0
    %p108 = por %p106, %p107
    %p109 = scmp.ne.s32.totalorder %s97, %s98
    %p110 = scmp.eq.s32.totalorder %s25, 1
    %p111 = por %p109, %p110
    %p113 = scmp.ne.s32.totalorder %s98, %s112
    %p114 = scmp.eq.s32.totalorder %s25, 0
    %p115 = por %p113, %p114
    %s117 = sadd.s32 %s116, 1
    %p120 = scmp.eq.s32.totalorder %s19, 1
    %p121 = scmp.ne.s32.totalorder %s116, %s118
    %p122 = scmp.eq.s32.totalorder %s19, 0
    %p123 = por %p121, %p122
    %p124 = scmp.ne.s32.totalorder %s116, %s118
    %p125 = scmp.eq.s32.totalorder %s24, 1
    %p126 = por %p124, %p125
    %p127 = scmp.ne.s32.totalorder %s118, %s119
    %p128 = scmp.eq.s32.totalorder %s24, 0
    %p129 = por %p127, %p128
    %p130 = scmp.ne.s32.totalorder %s118, %s119
    %p131 = scmp.eq.s32.totalorder %s25, 1
    %p132 = por %p130, %p131
    %p134 = scmp.ne.s32.totalorder %s119, %s133
    %p135 = scmp.eq.s32.totalorder %s25, 0
    %p136 = por %p134, %p135
    %s138 = sadd.s32 %s137, 1
    %p141 = scmp.eq.s32.totalorder %s19, 1
    %p142 = scmp.ne.s32.totalorder %s137, %s139
    %p143 = scmp.eq.s32.totalorder %s19, 0
    %p144 = por %p142, %p143
    %p145 = scmp.ne.s32.totalorder %s137, %s139
    %p146 = scmp.eq.s32.totalorder %s24, 1
    %p147 = por %p145, %p146
    %p148 = scmp.ne.s32.totalorder %s139, %s140
    %p149 = scmp.eq.s32.totalorder %s24, 0
    %p150 = por %p148, %p149
    %p151 = scmp.ne.s32.totalorder %s139, %s140
    %p152 = scmp.eq.s32.totalorder %s25, 1
    %p153 = por %p151, %p152
    %p155 = scmp.ne.s32.totalorder %s140, %s154
    %p156 = scmp.eq.s32.totalorder %s25, 0
    %p157 = por %p155, %p156
    %s159 = sadd.s32 %s158, 1
    %p162 = scmp.eq.s32.totalorder %s19, 1
    %p163 = scmp.ne.s32.totalorder %s158, %s160
    %p164 = scmp.eq.s32.totalorder %s19, 0
    %p165 = por %p163, %p164
    %p166 = scmp.ne.s32.totalorder %s158, %s160
    %p167 = scmp.eq.s32.totalorder %s24, 1
    %p168 = por %p166, %p167
    %p169 = scmp.ne.s32.totalorder %s160, %s161
    %p170 = scmp.eq.s32.totalorder %s24, 0
    %p171 = por %p169, %p170
    %p172 = scmp.ne.s32.totalorder %s160, %s161
    %p173 = scmp.eq.s32.totalorder %s25, 1
    %p174 = por %p172, %p173
    %p176 = scmp.ne.s32.totalorder %s161, %s175
    %p177 = scmp.eq.s32.totalorder %s25, 0
    %p178 = por %p176, %p177
    %s180 = sadd.s32 %s179, 1
    %p183 = scmp.eq.s32.totalorder %s19, 1
    %p184 = scmp.ne.s32.totalorder %s179, %s181
    %p185 = scmp.eq.s32.totalorder %s19, 0
    %p186 = por %p184, %p185
    %p187 = scmp.ne.s32.totalorder %s179, %s181
    %p188 = scmp.eq.s32.totalorder %s24, 1
    %p189 = por %p187, %p188
    %p190 = scmp.ne.s32.totalorder %s181, %s182
    %p191 = scmp.eq.s32.totalorder %s24, 0
    %p192 = por %p190, %p191
    %p193 = scmp.ne.s32.totalorder %s181, %s182
    %p194 = scmp.eq.s32.totalorder %s25, 1
    %p195 = por %p193, %p194
    %p197 = scmp.ne.s32.totalorder %s182, %s196
    %p198 = scmp.eq.s32.totalorder %s25, 0
    %p199 = por %p197, %p198
    %s201 = sadd.s32 %s200, 1
    %p204 = scmp.eq.s32.totalorder %s19, 1
    %p205 = scmp.ne.s32.totalorder %s200, %s202
    %p206 = scmp.eq.s32.totalorder %s19, 0
    %p207 = por %p205, %p206
    %p208 = scmp.ne.s32.totalorder %s200, %s202
    %p209 = scmp.eq.s32.totalorder %s24, 1
    %p210 = por %p208, %p209
    %p211 = scmp.ne.s32.totalorder %s202, %s203
    %p212 = scmp.eq.s32.totalorder %s24, 0
    %p213 = por %p211, %p212
    %p214 = scmp.ne.s32.totalorder %s202, %s203
    %p215 = scmp.eq.s32.totalorder %s25, 1
    %p216 = por %p214, %p215
    %p218 = scmp.ne.s32.totalorder %s203, %s217
    %p219 = scmp.eq.s32.totalorder %s25, 0
    %p220 = por %p218, %p219
    %s222 = sadd.s32 %s221, 1
    %p225 = scmp.eq.s32.totalorder %s19, 1
    %p226 = scmp.ne.s32.totalorder %s221, %s223
    %p227 = scmp.eq.s32.totalorder %s19, 0
    %p228 = por %p226, %p227
    %p229 = scmp.ne.s32.totalorder %s221, %s223
    %p230 = scmp.eq.s32.totalorder %s24, 1
    %p231 = por %p229, %p230
    %p232 = scmp.ne.s32.totalorder %s223, %s224
    %p233 = scmp.eq.s32.totalorder %s24, 0
    %p234 = por %p232, %p233
    %p235 = scmp.ne.s32.totalorder %s223, %s224
    %p236 = scmp.eq.s32.totalorder %s25, 1
    %p237 = por %p235, %p236
    %p239 = scmp.ne.s32.totalorder %s224, %s238
    %p240 = scmp.eq.s32.totalorder %s25, 0
    %p241 = por %p239, %p240
    %s243 = sadd.s32 %s242, 1
    %p246 = scmp.eq.s32.totalorder %s19, 1
    %p247 = scmp.ne.s32.totalorder %s242, %s244
    %p248 = scmp.eq.s32.totalorder %s19, 0
    %p249 = por %p247, %p248
    %p250 = scmp.ne.s32.totalorder %s242, %s244
    %p251 = scmp.eq.s32.totalorder %s24, 1
    %p252 = por %p250, %p251
    %p253 = scmp.ne.s32.totalorder %s244, %s245
    %p254 = scmp.eq.s32.totalorder %s24, 0
    %p255 = por %p253, %p254
    %p256 = scmp.ne.s32.totalorder %s244, %s245
    %p257 = scmp.eq.s32.totalorder %s25, 1
    %p258 = por %p256, %p257
    %p260 = scmp.ne.s32.totalorder %s245, %s259
    %p261 = scmp.eq.s32.totalorder %s25, 0
    %p262 = por %p260, %p261
    %s264 = sadd.s32 %s263, 1
    %p267 = scmp.eq.s32.totalorder %s19, 1
    %p268 = scmp.ne.s32.totalorder %s263, %s265
    %p269 = scmp.eq.s32.totalorder %s19, 0
    %p270 = por %p268, %p269
    %p271 = scmp.ne.s32.totalorder %s263, %s265
    %p272 = scmp.eq.s32.totalorder %s24, 1
    %p273 = por %p271, %p272
    %p274 = scmp.ne.s32.totalorder %s265, %s266
    %p275 = scmp.eq.s32.totalorder %s24, 0
    %p276 = por %p274, %p275
    %p277 = scmp.ne.s32.totalorder %s265, %s266
    %p278 = scmp.eq.s32.totalorder %s25, 1
    %p279 = por %p277, %p278
    %p281 = scmp.ne.s32.totalorder %s266, %s280
    %p282 = scmp.eq.s32.totalorder %s25, 0
    %p283 = por %p281, %p282
    %s285 = sadd.s32 %s284, 1
    %p288 = scmp.eq.s32.totalorder %s19, 1
    %p289 = scmp.ne.s32.totalorder %s284, %s286
    %p290 = scmp.eq.s32.totalorder %s19, 0
    %p291 = por %p289, %p290
    %p292 = scmp.ne.s32.totalorder %s284, %s286
    %p293 = scmp.eq.s32.totalorder %s24, 1
    %p294 = por %p292, %p293
    %p295 = scmp.ne.s32.totalorder %s286, %s287
    %p296 = scmp.eq.s32.totalorder %s24, 0
    %p297 = por %p295, %p296
    %p298 = scmp.ne.s32.totalorder %s286, %s287
    %p299 = scmp.eq.s32.totalorder %s25, 1
    %p300 = por %p298, %p299
    %p302 = scmp.ne.s32.totalorder %s287, %s301
    %p303 = scmp.eq.s32.totalorder %s25, 0
    %p304 = por %p302, %p303
    %s305 = ssub.s32 %s19, %s26
    %p306 = scmp.eq.s32.totalorder %s305, 0
    %s308 = sadd.s32 %s307, 1
    %s309 = scalar_select %p306, %s307, %s308
    %p312 = pneg %p306
    %p313 = scmp.eq.s32.totalorder %s19, 1
    %p314 = por %p312, %p313
    %p315 = scmp.ne.s32.totalorder %s307, %s310
    %p316 = scmp.eq.s32.totalorder %s19, 0
    %p317 = por %p315, %p316
    %p318 = scmp.ne.s32.totalorder %s307, %s310
    %p319 = scmp.eq.s32.totalorder %s24, 1
    %p320 = por %p318, %p319
    %p321 = scmp.ne.s32.totalorder %s310, %s311
    %p322 = scmp.eq.s32.totalorder %s24, 0
    %p323 = por %p321, %p322
    %p324 = scmp.ne.s32.totalorder %s310, %s311
    %p325 = scmp.eq.s32.totalorder %s25, 1
    %p326 = por %p324, %p325
    %p328 = scmp.ne.s32.totalorder %s311, %s327
    %p329 = scmp.eq.s32.totalorder %s25, 0
    %p330 = por %p328, %p329
    %p331 = scmp.le.s32.totalorder 1, %s19
    %p332 = scmp.lt.s32.totalorder %s19, 3
    %p333 = pnand %p331, %p332
    %p334 = pneg %p333
    // Predicated region
    $region9: #{transformer_based_forward.9} parent=5 // pred_check
      _
    $region10: #{transformer_based_forward.9} parent=5 // pred_check_branch
      %336 = sbr.rel (%p333) target = $region12
    $region11: #{transformer_based_forward.9} parent=5 // pred_region
      %s337 = ssub.s32 %s19, 1
      // Predicated region
      $region13: #{transformer_based_forward.9} parent=11 // pred_check
        %p338 = pneg %p66
      $region14: #{transformer_based_forward.9} parent=11 // pred_check_branch
        %340 = sbr.rel (%p338) target = $region16
      $region15: #{transformer_based_forward.9} parent=11 // pred_region
        _
      $region16: #{transformer_based_forward.9} parent=11 // pred_fallthru
        _
      // Predicated region
      $region17: #{transformer_based_forward.9} parent=11 // pred_check
        %p341 = pneg %p87
      $region18: #{transformer_based_forward.9} parent=11 // pred_check_branch
        %343 = sbr.rel (%p341) target = $region20
      $region19: #{transformer_based_forward.9} parent=11 // pred_region
        _
      $region20: #{transformer_based_forward.9} parent=11 // pred_fallthru
        _
      // Predicated region
      $region21: #{transformer_based_forward.9} parent=11 // pred_check
        %p344 = pneg %p108
      $region22: #{transformer_based_forward.9} parent=11 // pred_check_branch
        %346 = sbr.rel (%p344) target = $region24
      $region23: #{transformer_based_forward.9} parent=11 // pred_region
        _
      $region24: #{transformer_based_forward.9} parent=11 // pred_fallthru
        _
      // Predicated region
      $region25: #{transformer_based_forward.9} parent=11 // pred_check
        %p347 = pneg %p129
      $region26: #{transformer_based_forward.9} parent=11 // pred_check_branch
        %349 = sbr.rel (%p347) target = $region28
      $region27: #{transformer_based_forward.9} parent=11 // pred_region
        _
      $region28: #{transformer_based_forward.9} parent=11 // pred_fallthru
        _
      // Predicated region
      $region29: #{transformer_based_forward.9} parent=11 // pred_check
        %p350 = pneg %p150
      $region30: #{transformer_based_forward.9} parent=11 // pred_check_branch
        %352 = sbr.rel (%p350) target = $region32
      $region31: #{transformer_based_forward.9} parent=11 // pred_region
        _
      $region32: #{transformer_based_forward.9} parent=11 // pred_fallthru
        _
      // Predicated region
      $region33: #{transformer_based_forward.9} parent=11 // pred_check
        %p353 = pneg %p171
      $region34: #{transformer_based_forward.9} parent=11 // pred_check_branch
        %355 = sbr.rel (%p353) target = $region36
      $region35: #{transformer_based_forward.9} parent=11 // pred_region
        _
      $region36: #{transformer_based_forward.9} parent=11 // pred_fallthru
        _
      // Predicated region
      $region37: #{transformer_based_forward.9} parent=11 // pred_check
        %p356 = pneg %p192
      $region38: #{transformer_based_forward.9} parent=11 // pred_check_branch
        %358 = sbr.rel (%p356) target = $region40
      $region39: #{transformer_based_forward.9} parent=11 // pred_region
        _
      $region40: #{transformer_based_forward.9} parent=11 // pred_fallthru
        _
      // Predicated region
      $region41: #{transformer_based_forward.9} parent=11 // pred_check
        %p359 = pneg %p213
      $region42: #{transformer_based_forward.9} parent=11 // pred_check_branch
        %361 = sbr.rel (%p359) target = $region44
      $region43: #{transformer_based_forward.9} parent=11 // pred_region
        _
      $region44: #{transformer_based_forward.9} parent=11 // pred_fallthru
        _
      // Predicated region
      $region45: #{transformer_based_forward.9} parent=11 // pred_check
        %p362 = pneg %p234
      $region46: #{transformer_based_forward.9} parent=11 // pred_check_branch
        %364 = sbr.rel (%p362) target = $region48
      $region47: #{transformer_based_forward.9} parent=11 // pred_region
        _
      $region48: #{transformer_based_forward.9} parent=11 // pred_fallthru
        _
      // Predicated region
      $region49: #{transformer_based_forward.9} parent=11 // pred_check
        %p365 = pneg %p255
      $region50: #{transformer_based_forward.9} parent=11 // pred_check_branch
        %367 = sbr.rel (%p365) target = $region52
      $region51: #{transformer_based_forward.9} parent=11 // pred_region
        _
      $region52: #{transformer_based_forward.9} parent=11 // pred_fallthru
        _
      // Predicated region
      $region53: #{transformer_based_forward.9} parent=11 // pred_check
        %p368 = pneg %p276
      $region54: #{transformer_based_forward.9} parent=11 // pred_check_branch
        %370 = sbr.rel (%p368) target = $region56
      $region55: #{transformer_based_forward.9} parent=11 // pred_region
        _
      $region56: #{transformer_based_forward.9} parent=11 // pred_fallthru
        _
      // Predicated region
      $region57: #{transformer_based_forward.9} parent=11 // pred_check
        %p371 = pneg %p297
      $region58: #{transformer_based_forward.9} parent=11 // pred_check_branch
        %373 = sbr.rel (%p371) target = $region60
      $region59: #{transformer_based_forward.9} parent=11 // pred_region
        _
      $region60: #{transformer_based_forward.9} parent=11 // pred_fallthru
        _
    $region12: #{transformer_based_forward.9} parent=5 // pred_fallthru
      _
    %p374 = scmp.lt.s32.totalorder %s19, 2
    // Predicated region
    $region61: #{transformer_based_forward.9} parent=5 // pred_check
      %p375 = pneg %p374
    $region62: #{transformer_based_forward.9} parent=5 // pred_check_branch
      %377 = sbr.rel (%p375) target = $region64
    $region63: #{transformer_based_forward.9} parent=5 // pred_region
      // Predicated region
      $region65: #{transformer_based_forward.9} parent=63 // pred_check
        %p378 = pneg %p39
      $region66: #{transformer_based_forward.9} parent=63 // pred_check_branch
        %380 = sbr.rel (%p378) target = $region68
      $region67: #{transformer_based_forward.9} parent=63 // pred_region
        %p381 = scmp.lt.s32.totalorder %s19, 1
        %s382 = scalar_select %p381, %s19, 1
        %s383 = smul.addr %s382, 8
        %s384 = scalar_lea.vmem %s0, %s383
      $region68: #{transformer_based_forward.9} parent=63 // pred_fallthru
        _
    $region64: #{transformer_based_forward.9} parent=5 // pred_fallthru
      _
    %p385 = scmp.le.s32.totalorder 1, %s19
    %p386 = scmp.lt.s32.totalorder %s19, 3
    %p387 = pnand %p385, %p386
    %p388 = pneg %p387
    // Predicated region
    $region69: #{transformer_based_forward.9} parent=5 // pred_check
      _
    $region70: #{transformer_based_forward.9} parent=5 // pred_check_branch
      %390 = sbr.rel (%p387) target = $region72
    $region71: #{transformer_based_forward.9} parent=5 // pred_region
      %s391 = ssub.s32 %s19, 1
      %p392 = scmp.lt.s32.totalorder %s24, 1
      %s393 = scalar_select %p392, %s24, 1
      %s394 = smul.addr %s393, 8
      %s395 = scalar_lea.vmem %s0, %s394
      %p396 = pneg %p45
      %p397 = pneg %p42
      %p398 = pneg %p66
      %p399 = pneg %p63
      %p400 = pneg %p87
      %p401 = pneg %p84
      %p402 = pneg %p108
      %p403 = pneg %p105
      %p404 = pneg %p129
      %p405 = pneg %p126
      %p406 = pneg %p150
      %p407 = pneg %p147
      %p408 = pneg %p171
      %p409 = pneg %p168
      %p410 = pneg %p192
      %p411 = pneg %p189
      %p412 = pneg %p213
      %p413 = pneg %p210
      %p414 = pneg %p234
      %p415 = pneg %p231
      %p416 = pneg %p255
      %p417 = pneg %p252
      %p418 = pneg %p276
      %p419 = pneg %p273
      %p420 = pneg %p297
      %p421 = pneg %p294
      %p422 = pneg %p323
      %p423 = pneg %p320
      %p424 = scmp.lt.s32.totalorder %s24, 1
      %s425 = scalar_select %p424, %s24, 1
      %s426 = smul.addr %s425, 8
      %s427 = scalar_lea.vmem %s13, %s426
      %p428 = scmp.lt.s32.totalorder %s24, 1
      %s429 = scalar_select %p428, %s24, 1
      %s430 = smul.addr %s429, 8
      %s431 = scalar_lea.vmem %s0, %s430
      %p432 = scmp.lt.s32.totalorder %s24, 1
      %s433 = scalar_select %p432, %s24, 1
      %s434 = smul.addr %s433, 8
      %s435 = scalar_lea.vmem %s13, %s434
      %v437 = vld [vmem:[%s431] sm:$0xff]
      %v438 = vld [vmem:[%s5] sm:$0x1]
      %v439 = vld [vmem:[%s6] sm:$0x1]
      %vm440 = vcmask 261120
      %v441 = vsel %vm440, %v437, 0.0
      %442 = vadd.xlane.f32.xlu0 %v441
      %v443 = vpop.xlane.xlu0 %442
      %v444 = vrcp.pop 32.0
      %v445 = vmul.f32 %v443, %v444
      %v446 = vsub.f32 %v437, %v445
      %v447 = vmul.f32 %v446, %v446
      %v448 = vsel %vm440, %v447, 0.0
      %449 = vadd.xlane.f32.xlu0 %v448
      %v450 = vpop.xlane.xlu0 %449
      %v451 = vmul.f32 %v450, %v444
      %v452 = vadd.f32 %v451, 1e-05
      %v453 = vrsqrt.pop %v452
      %v454 = vmul.f32 %v446, %v453
      %v456 = vlaneseq
      %v457 = vshrl.u32 %v456, 7
      %v458 = vsub.s32 0, %v457
      %v459 = vrot.slane %v438, %v458
      %v461 = vmul.f32 %v454, %v459
      %v463 = vlaneseq
      %v464 = vshrl.u32 %v463, 7
      %v465 = vsub.s32 0, %v464
      %v466 = vrot.slane %v439, %v465
      %v468 = vadd.f32 %v461, %v466
      %v469 = vpack.c.bf16 %v468, %v468
      %v470 = vld [vmem:[%s1] sm:$0xf]
      %v471 = vld [vmem:[%s1 + $0x4] sm:$0xf]
      %v472 = vld [vmem:[%s1 + $0x8] sm:$0xf]
      %v473 = vld [vmem:[%s1 + $0xc] sm:$0xf]
      %v474 = vld [vmem:[%s2] sm:$0x1]
      %v476 = vlaneseq
      %v477 = vshrl.u32 %v476, 7
      %v478 = vsub.s32 0, %v477
      %v479 = vrot.slane %v474, %v478
      %v485 = vunpack.c.l.b16 %v470
      %v486 = vunpack.c.l.b16 %v471
      %v487 = vunpack.c.l.b16 %v472
      %v488 = vunpack.c.l.b16 %v473
      %v489 = vpack.c.b16 %v486, %v485
      %v490 = vpack.c.b16 %v488, %v487
      %v494 = vsel %vm440, %v469, 0
      %496 = vmatprep.subr.bf16.mxu0 0
      %497 = vmatpush1.bf16.msra.mxu0 %v489
      %498 = vmatprep.subr.bf16.mxu0 0
      %499 = vmatpush1.bf16.msra.mxu0 %v490
      %500 = vmatprep.subr.bf16.mxu0 0
      %501 = vmatpush1.bf16.msra.mxu0 0
      %502 = vmatprep.subr.bf16.mxu0 0
      %503 = vmatpush1.bf16.msra.mxu0 0
      %504 = vmatprep.subr.bf16.mxu0 0
      %505 = vmatpush1.bf16.msra.mxu0 0
      %506 = vmatprep.subr.bf16.mxu0 0
      %507 = vmatpush1.bf16.msra.mxu0 0
      %508 = vmatprep.subr.bf16.mxu0 0
      %509 = vmatpush1.bf16.msra.mxu0 0
      %510 = vmatprep.subr.bf16.mxu0 0
      %511 = vmatpush1.bf16.msra.mxu0 0
      %512 = vmatprep.subr.bf16.mxu0 0
      %513 = vmatpush1.bf16.msra.mxu0 0
      %514 = vmatprep.subr.bf16.mxu0 0
      %515 = vmatpush1.bf16.msra.mxu0 0
      %516 = vmatprep.subr.bf16.mxu0 0
      %517 = vmatpush1.bf16.msra.mxu0 0
      %518 = vmatprep.subr.bf16.mxu0 0
      %519 = vmatpush1.bf16.msra.mxu0 0
      %520 = vmatprep.subr.bf16.mxu0 0
      %521 = vmatpush1.bf16.msra.mxu0 0
      %522 = vmatprep.subr.bf16.mxu0 0
      %523 = vmatpush1.bf16.msra.mxu0 0
      %524 = vmatprep.subr.bf16.mxu0 0
      %525 = vmatpush1.bf16.msra.mxu0 0
      %526 = vmatprep.subr.bf16.mxu0 0
      %527 = vmatpush1.bf16.msra.mxu0 0
      %528 = vmatprep.mubr.bf16.mxu0 0
      %529 = vmatmul.mubr.bf16.gmra.mrb[0].mxu0 %v494
      %v530 = vpop.f32.mrb[0].mxu0
      %v531 = vadd.f32 %v479, %v530
      %v532 = vpop.f32.mrb[0].mxu0
      %v533 = vpop.f32.mrb[0].mxu0
      %v534 = vpop.f32.mrb[0].mxu0
      %535 = vdwg.mxu0
      %v536 = vmul.f32 %v531, 0.35355338
      %v537 = vlaneseq
      %v538 = vshrl.u32 %v537, 7
      %v539 = vlaneseq
      %v540 = vand.u32 %v539, 127
      %vm541 = vcmp.gt.s32.totalorder %v540, %v538
      %v542 = vsel %vm541, -1e+09, 0.0
      %v543 = vpack.c.bf16 %v536, %v536
      %v544 = vpack.c.bf16 %v531, %v531
      %546 = vrot.lane.b32.xlu0 %v544, 96
      %v547 = vpop.permute.xlu0 %546
      %vm548 = vcmask 64512
      %v550 = vsel %vm548, %v543, 0
      %v553 = vsel %vm548, %v547, 0
      %555 = vmatprep.subr.bf16.mxu0 0
      %556 = vmatpush1.bf16.xpose.msra.mxu0 %v553
      %557 = vmatprep.subr.bf16.mxu0 0
      %558 = vmatpush1.bf16.xpose.msra.mxu0 0
      %559 = vmatprep.subr.bf16.mxu0 0
      %560 = vmatpush1.bf16.xpose.msra.mxu0 0
      %561 = vmatprep.subr.bf16.mxu0 0
      %562 = vmatpush1.bf16.xpose.msra.mxu0 0
      %563 = vmatprep.subr.bf16.mxu0 0
      %564 = vmatpush1.bf16.xpose.msra.mxu0 0
      %565 = vmatprep.subr.bf16.mxu0 0
      %566 = vmatpush1.bf16.xpose.msra.mxu0 0
      %567 = vmatprep.subr.bf16.mxu0 0
      %568 = vmatpush1.bf16.xpose.msra.mxu0 0
      %569 = vmatprep.subr.bf16.mxu0 0
      %570 = vmatpush1.bf16.xpose.msra.mxu0 0
      %571 = vmatprep.subr.bf16.mxu0 0
      %572 = vmatpush1.bf16.xpose.msra.mxu0 0
      %573 = vmatprep.subr.bf16.mxu0 0
      %574 = vmatpush1.bf16.xpose.msra.mxu0 0
      %575 = vmatprep.subr.bf16.mxu0 0
      %576 = vmatpush1.bf16.xpose.msra.mxu0 0
      %577 = vmatprep.subr.bf16.mxu0 0
      %578 = vmatpush1.bf16.xpose.msra.mxu0 0
      %579 = vmatprep.subr.bf16.mxu0 0
      %580 = vmatpush1.bf16.xpose.msra.mxu0 0
      %581 = vmatprep.subr.bf16.mxu0 0
      %582 = vmatpush1.bf16.xpose.msra.mxu0 0
      %583 = vmatprep.subr.bf16.mxu0 0
      %584 = vmatpush1.bf16.xpose.msra.mxu0 0
      %585 = vmatprep.subr.bf16.mxu0 0
      %586 = vmatpush1.bf16.xpose.msra.mxu0 0
      %587 = vmatprep.mubr.bf16.mxu0 0
      %588 = vmatmul.mubr.bf16.gmra.mrb[0].mxu0 %v550
      %v589 = vpop.f32.mrb[0].mxu0
      %v590 = vadd.f32 %v542, %v589
      %v591 = vpop.f32.mrb[0].mxu0
      %v592 = vpop.f32.mrb[0].mxu0
      %v593 = vpop.f32.mrb[0].mxu0
      %594 = vdwg.mxu0
      %v595 = vsel %vm548, %v590, -inf
      %596 = vmax.xlane.f32.xlu0 %v595
      %v597 = vpop.xlane.xlu0 %596
      %v598 = vsub.f32 %v590, %v597
      %v599 = vmul.f32 %v598, 1.442695
      %v600 = vpow.pop %v599
      %v601 = vsel %vm548, %v600, 0.0
      %602 = vadd.xlane.f32.xlu0 %v601
      %v603 = vpop.xlane.xlu0 %602
      %v604 = vrcp.pop %v603
      %v605 = vmul.f32 %v600, %v604
      %v606 = vpack.c.bf16 %v605, %v605
      %607 = vrot.lane.b32.xlu0 %v544, 64
      %v608 = vpop.permute.xlu0 %607
      %v610 = vsel %vm548, %v606, 0
      %vm612 = vcmask 1043456
      %v614 = vsel %vm612, %v608, 0
      %616 = vmatprep.subr.bf16.mxu0 0
      %617 = vmatpush1.bf16.msra.mxu0 %v614
      %618 = vmatprep.subr.bf16.mxu0 0
      %619 = vmatpush1.bf16.msra.mxu0 0
      %620 = vmatprep.subr.bf16.mxu0 0
      %621 = vmatpush1.bf16.msra.mxu0 0
      %622 = vmatprep.subr.bf16.mxu0 0
      %623 = vmatpush1.bf16.msra.mxu0 0
      %624 = vmatprep.subr.bf16.mxu0 0
      %625 = vmatpush1.bf16.msra.mxu0 0
      %626 = vmatprep.subr.bf16.mxu0 0
      %627 = vmatpush1.bf16.msra.mxu0 0
      %628 = vmatprep.subr.bf16.mxu0 0
      %629 = vmatpush1.bf16.msra.mxu0 0
      %630 = vmatprep.subr.bf16.mxu0 0
      %631 = vmatpush1.bf16.msra.mxu0 0
      %632 = vmatprep.subr.bf16.mxu0 0
      %633 = vmatpush1.bf16.msra.mxu0 0
      %634 = vmatprep.subr.bf16.mxu0 0
      %635 = vmatpush1.bf16.msra.mxu0 0
      %636 = vmatprep.subr.bf16.mxu0 0
      %637 = vmatpush1.bf16.msra.mxu0 0
      %638 = vmatprep.subr.bf16.mxu0 0
      %639 = vmatpush1.bf16.msra.mxu0 0
      %640 = vmatprep.subr.bf16.mxu0 0
      %641 = vmatpush1.bf16.msra.mxu0 0
      %642 = vmatprep.subr.bf16.mxu0 0
      %643 = vmatpush1.bf16.msra.mxu0 0
      %644 = vmatprep.subr.bf16.mxu0 0
      %645 = vmatpush1.bf16.msra.mxu0 0
      %646 = vmatprep.subr.bf16.mxu0 0
      %647 = vmatpush1.bf16.msra.mxu0 0
      %648 = vmatprep.mubr.bf16.mxu0 0
      %649 = vmatmul.mubr.bf16.gmra.mrb[0].mxu0 %v610
      %v650 = vpop.f32.mrb[0].mxu0
      %v651 = vadd.f32 0.0, %v650
      %v652 = vpop.f32.mrb[0].mxu0
      %v653 = vpop.f32.mrb[0].mxu0
      %v654 = vpop.f32.mrb[0].mxu0
      %655 = vdwg.mxu0
      %v656 = vpack.c.bf16 %v651, %v651
      %v657 = vld [vmem:[%s3] sm:$0xf]
      %659 = vrot.lane.b32.xlu0 %v543, 120
      %v660 = vpop.permute.xlu0 %659
      %661 = vrot.lane.b32.xlu0 %v544, 88
      %v662 = vpop.permute.xlu0 %661
      %v664 = vsel %vm548, %v660, 0
      %v667 = vsel %vm548, %v662, 0
      %669 = vmatprep.subr.bf16.mxu0 0
      %670 = vmatpush1.bf16.xpose.msra.mxu0 %v667
      %671 = vmatprep.subr.bf16.mxu0 0
      %672 = vmatpush1.bf16.xpose.msra.mxu0 0
      %673 = vmatprep.subr.bf16.mxu0 0
      %674 = vmatpush1.bf16.xpose.msra.mxu0 0
      %675 = vmatprep.subr.bf16.mxu0 0
      %676 = vmatpush1.bf16.xpose.msra.mxu0 0
      %677 = vmatprep.subr.bf16.mxu0 0
      %678 = vmatpush1.bf16.xpose.msra.mxu0 0
      %679 = vmatprep.subr.bf16.mxu0 0
      %680 = vmatpush1.bf16.xpose.msra.mxu0 0
      %681 = vmatprep.subr.bf16.mxu0 0
      %682 = vmatpush1.bf16.xpose.msra.mxu0 0
      %683 = vmatprep.subr.bf16.mxu0 0
      %684 = vmatpush1.bf16.xpose.msra.mxu0 0
      %685 = vmatprep.subr.bf16.mxu0 0
      %686 = vmatpush1.bf16.xpose.msra.mxu0 0
      %687 = vmatprep.subr.bf16.mxu0 0
      %688 = vmatpush1.bf16.xpose.msra.mxu0 0
      %689 = vmatprep.subr.bf16.mxu0 0
      %690 = vmatpush1.bf16.xpose.msra.mxu0 0
      %691 = vmatprep.subr.bf16.mxu0 0
      %692 = vmatpush1.bf16.xpose.msra.mxu0 0
      %693 = vmatprep.subr.bf16.mxu0 0
      %694 = vmatpush1.bf16.xpose.msra.mxu0 0
      %695 = vmatprep.subr.bf16.mxu0 0
      %696 = vmatpush1.bf16.xpose.msra.mxu0 0
      %697 = vmatprep.subr.bf16.mxu0 0
      %698 = vmatpush1.bf16.xpose.msra.mxu0 0
      %699 = vmatprep.subr.bf16.mxu0 0
      %700 = vmatpush1.bf16.xpose.msra.mxu0 0
      %701 = vmatprep.mubr.bf16.mxu0 0
      %702 = vmatmul.mubr.bf16.gmra.mrb[0].mxu0 %v664
      %v703 = vpop.f32.mrb[0].mxu0
      %v704 = vadd.f32 %v542, %v703
      %v705 = vpop.f32.mrb[0].mxu0
      %v706 = vpop.f32.mrb[0].mxu0
      %v707 = vpop.f32.mrb[0].mxu0
      %708 = vdwg.mxu0
      %v709 = vsel %vm548, %v704, -inf
      %710 = vmax.xlane.f32.xlu0 %v709
      %v711 = vpop.xlane.xlu0 %710
      %v712 = vsub.f32 %v704, %v711
      %v713 = vmul.f32 %v712, 1.442695
      %v714 = vpow.pop %v713
      %v715 = vsel %vm548, %v714, 0.0
      %716 = vadd.xlane.f32.xlu0 %v715
      %v717 = vpop.xlane.xlu0 %716
      %v718 = vrcp.pop %v717
      %v719 = vmul.f32 %v714, %v718
      %v720 = vpack.c.bf16 %v719, %v719
      %721 = vrot.lane.b32.xlu0 %v544, 56
      %v722 = vpop.permute.xlu0 %721
      %v724 = vsel %vm548, %v720, 0
      %v727 = vsel %vm612, %v722, 0
      %729 = vmatprep.subr.bf16.mxu0 0
      %730 = vmatpush1.bf16.msra.mxu0 %v727
      %731 = vmatprep.subr.bf16.mxu0 0
      %732 = vmatpush1.bf16.msra.mxu0 0
      %733 = vmatprep.subr.bf16.mxu0 0
      %734 = vmatpush1.bf16.msra.mxu0 0
      %735 = vmatprep.subr.bf16.mxu0 0
      %736 = vmatpush1.bf16.msra.mxu0 0
      %737 = vmatprep.subr.bf16.mxu0 0
      %738 = vmatpush1.bf16.msra.mxu0 0
      %739 = vmatprep.subr.bf16.mxu0 0
      %740 = vmatpush1.bf16.msra.mxu0 0
      %741 = vmatprep.subr.bf16.mxu0 0
      %742 = vmatpush1.bf16.msra.mxu0 0
      %743 = vmatprep.subr.bf16.mxu0 0
      %744 = vmatpush1.bf16.msra.mxu0 0
      %745 = vmatprep.subr.bf16.mxu0 0
      %746 = vmatpush1.bf16.msra.mxu0 0
      %747 = vmatprep.subr.bf16.mxu0 0
      %748 = vmatpush1.bf16.msra.mxu0 0
      %749 = vmatprep.subr.bf16.mxu0 0
      %750 = vmatpush1.bf16.msra.mxu0 0
      %751 = vmatprep.subr.bf16.mxu0 0
      %752 = vmatpush1.bf16.msra.mxu0 0
      %753 = vmatprep.subr.bf16.mxu0 0
      %754 = vmatpush1.bf16.msra.mxu0 0
      %755 = vmatprep.subr.bf16.mxu0 0
      %756 = vmatpush1.bf16.msra.mxu0 0
      %757 = vmatprep.subr.bf16.mxu0 0
      %758 = vmatpush1.bf16.msra.mxu0 0
      %759 = vmatprep.subr.bf16.mxu0 0
      %760 = vmatpush1.bf16.msra.mxu0 0
      %761 = vmatprep.mubr.bf16.mxu0 0
      %762 = vmatmul.mubr.bf16.gmra.mrb[0].mxu0 %v724
      %v763 = vpop.f32.mrb[0].mxu0
      %v764 = vadd.f32 0.0, %v763
      %v765 = vpop.f32.mrb[0].mxu0
      %v766 = vpop.f32.mrb[0].mxu0
      %v767 = vpop.f32.mrb[0].mxu0
      %768 = vdwg.mxu0
      %v769 = vpack.c.bf16 %v764, %v764
      %s770 = scalar_lea.vmem %s3, 4
      %v771 = vld [vmem:[%s770] sm:$0xf]
      %v773 = vsel %vm548, %v769, 0
      %v776 = vsel %vm612, %v771, 0
      %778 = vmatprep.subr.bf16.mxu0 0
      %779 = vmatpush1.bf16.msra.mxu0 %v776
      %780 = vmatprep.subr.bf16.mxu0 0
      %781 = vmatpush1.bf16.msra.mxu0 0
      %782 = vmatprep.subr.bf16.mxu0 0
      %783 = vmatpush1.bf16.msra.mxu0 0
      %784 = vmatprep.subr.bf16.mxu0 0
      %785 = vmatpush1.bf16.msra.mxu0 0
      %786 = vmatprep.subr.bf16.mxu0 0
      %787 = vmatpush1.bf16.msra.mxu0 0
      %788 = vmatprep.subr.bf16.mxu0 0
      %789 = vmatpush1.bf16.msra.mxu0 0
      %790 = vmatprep.subr.bf16.mxu0 0
      %791 = vmatpush1.bf16.msra.mxu0 0
      %792 = vmatprep.subr.bf16.mxu0 0
      %793 = vmatpush1.bf16.msra.mxu0 0
      %794 = vmatprep.subr.bf16.mxu0 0
      %795 = vmatpush1.bf16.msra.mxu0 0
      %796 = vmatprep.subr.bf16.mxu0 0
      %797 = vmatpush1.bf16.msra.mxu0 0
      %798 = vmatprep.subr.bf16.mxu0 0
      %799 = vmatpush1.bf16.msra.mxu0 0
      %800 = vmatprep.subr.bf16.mxu0 0
      %801 = vmatpush1.bf16.msra.mxu0 0
      %802 = vmatprep.subr.bf16.mxu0 0
      %803 = vmatpush1.bf16.msra.mxu0 0
      %804 = vmatprep.subr.bf16.mxu0 0
      %805 = vmatpush1.bf16.msra.mxu0 0
      %806 = vmatprep.subr.bf16.mxu0 0
      %807 = vmatpush1.bf16.msra.mxu0 0
      %808 = vmatprep.subr.bf16.mxu0 0
      %809 = vmatpush1.bf16.msra.mxu0 0
      %810 = vmatprep.mubr.bf16.mxu0 0
      %811 = vmatmul.mubr.bf16.gmra.mrb[0].mxu0 %v773
      %v812 = vpop.f32.mrb[0].mxu0
      %v813 = vadd.f32 0.0, %v812
      %v814 = vpop.f32.mrb[0].mxu0
      %v815 = vpop.f32.mrb[0].mxu0
      %v816 = vpop.f32.mrb[0].mxu0
      %817 = vdwg.mxu0
      %v819 = vsel %vm548, %v656, 0
      %v822 = vsel %vm612, %v657, 0
      %824 = vmatprep.subr.bf16.mxu0 0
      %825 = vmatpush1.bf16.msra.mxu0 %v822
      %826 = vmatprep.subr.bf16.mxu0 0
      %827 = vmatpush1.bf16.msra.mxu0 0
      %828 = vmatprep.subr.bf16.mxu0 0
      %829 = vmatpush1.bf16.msra.mxu0 0
      %830 = vmatprep.subr.bf16.mxu0 0
      %831 = vmatpush1.bf16.msra.mxu0 0
      %832 = vmatprep.subr.bf16.mxu0 0
      %833 = vmatpush1.bf16.msra.mxu0 0
      %834 = vmatprep.subr.bf16.mxu0 0
      %835 = vmatpush1.bf16.msra.mxu0 0
      %836 = vmatprep.subr.bf16.mxu0 0
      %837 = vmatpush1.bf16.msra.mxu0 0
      %838 = vmatprep.subr.bf16.mxu0 0
      %839 = vmatpush1.bf16.msra.mxu0 0
      %840 = vmatprep.subr.bf16.mxu0 0
      %841 = vmatpush1.bf16.msra.mxu0 0
      %842 = vmatprep.subr.bf16.mxu0 0
      %843 = vmatpush1.bf16.msra.mxu0 0
      %844 = vmatprep.subr.bf16.mxu0 0
      %845 = vmatpush1.bf16.msra.mxu0 0
      %846 = vmatprep.subr.bf16.mxu0 0
      %847 = vmatpush1.bf16.msra.mxu0 0
      %848 = vmatprep.subr.bf16.mxu0 0
      %849 = vmatpush1.bf16.msra.mxu0 0
      %850 = vmatprep.subr.bf16.mxu0 0
      %851 = vmatpush1.bf16.msra.mxu0 0
      %852 = vmatprep.subr.bf16.mxu0 0
      %853 = vmatpush1.bf16.msra.mxu0 0
      %854 = vmatprep.subr.bf16.mxu0 0
      %855 = vmatpush1.bf16.msra.mxu0 0
      %856 = vmatprep.mubr.bf16.mxu0 0
      %857 = vmatmul.mubr.bf16.gmra.mrb[0].mxu0 %v819
      %v858 = vpop.f32.mrb[0].mxu0
      %v859 = vadd.f32 %v813, %v858
      %v860 = vpop.f32.mrb[0].mxu0
      %v861 = vpop.f32.mrb[0].mxu0
      %v862 = vpop.f32.mrb[0].mxu0
      %863 = vdwg.mxu0
      %864 = vrot.lane.b32.xlu0 %v543, 112
      %v865 = vpop.permute.xlu0 %864
      %866 = vrot.lane.b32.xlu0 %v544, 80
      %v867 = vpop.permute.xlu0 %866
      %v869 = vsel %vm548, %v865, 0
      %v872 = vsel %vm548, %v867, 0
      %874 = vmatprep.subr.bf16.mxu0 0
      %875 = vmatpush1.bf16.xpose.msra.mxu0 %v872
      %876 = vmatprep.subr.bf16.mxu0 0
      %877 = vmatpush1.bf16.xpose.msra.mxu0 0
      %878 = vmatprep.subr.bf16.mxu0 0
      %879 = vmatpush1.bf16.xpose.msra.mxu0 0
      %880 = vmatprep.subr.bf16.mxu0 0
      %881 = vmatpush1.bf16.xpose.msra.mxu0 0
      %882 = vmatprep.subr.bf16.mxu0 0
      %883 = vmatpush1.bf16.xpose.msra.mxu0 0
      %884 = vmatprep.subr.bf16.mxu0 0
      %885 = vmatpush1.bf16.xpose.msra.mxu0 0
      %886 = vmatprep.subr.bf16.mxu0 0
      %887 = vmatpush1.bf16.xpose.msra.mxu0 0
      %888 = vmatprep.subr.bf16.mxu0 0
      %889 = vmatpush1.bf16.xpose.msra.mxu0 0
      %890 = vmatprep.subr.bf16.mxu0 0
      %891 = vmatpush1.bf16.xpose.msra.mxu0 0
      %892 = vmatprep.subr.bf16.mxu0 0
      %893 = vmatpush1.bf16.xpose.msra.mxu0 0
      %894 = vmatprep.subr.bf16.mxu0 0
      %895 = vmatpush1.bf16.xpose.msra.mxu0 0
      %896 = vmatprep.subr.bf16.mxu0 0
      %897 = vmatpush1.bf16.xpose.msra.mxu0 0
      %898 = vmatprep.subr.bf16.mxu0 0
      %899 = vmatpush1.bf16.xpose.msra.mxu0 0
      %900 = vmatprep.subr.bf16.mxu0 0
      %901 = vmatpush1.bf16.xpose.msra.mxu0 0
      %902 = vmatprep.subr.bf16.mxu0 0
      %903 = vmatpush1.bf16.xpose.msra.mxu0 0
      %904 = vmatprep.subr.bf16.mxu0 0
      %905 = vmatpush1.bf16.xpose.msra.mxu0 0
      %906 = vmatprep.mubr.bf16.mxu0 0
      %907 = vmatmul.mubr.bf16.gmra.mrb[0].mxu0 %v869
      %v908 = vpop.f32.mrb[0].mxu0
      %v909 = vadd.f32 %v542, %v908
      %v910 = vpop.f32.mrb[0].mxu0
      %v911 = vpop.f32.mrb[0].mxu0
      %v912 = vpop.f32.mrb[0].mxu0
      %913 = vdwg.mxu0
      %v914 = vsel %vm548, %v909, -inf
      %915 = vmax.xlane.f32.xlu0 %v914
      %v916 = vpop.xlane.xlu0 %915
      %v917 = vsub.f32 %v909, %v916
      %v918 = vmul.f32 %v917, 1.442695
      %v919 = vpow.pop %v918
      %v920 = vsel %vm548, %v919, 0.0
      %921 = vadd.xlane.f32.xlu0 %v920
      %v922 = vpop.xlane.xlu0 %921
      %v923 = vrcp.pop %v922
      %v924 = vmul.f32 %v919, %v923
      %v925 = vpack.c.bf16 %v924, %v924
      %926 = vrot.lane.b32.xlu0 %v544, 48
      %v927 = vpop.permute.xlu0 %926
      %v929 = vsel %vm548, %v925, 0
      %v932 = vsel %vm612, %v927, 0
      %934 = vmatprep.subr.bf16.mxu0 0
      %935 = vmatpush1.bf16.msra.mxu0 %v932
      %936 = vmatprep.subr.bf16.mxu0 0
      %937 = vmatpush1.bf16.msra.mxu0 0
      %938 = vmatprep.subr.bf16.mxu0 0
      %939 = vmatpush1.bf16.msra.mxu0 0
      %940 = vmatprep.subr.bf16.mxu0 0
      %941 = vmatpush1.bf16.msra.mxu0 0
      %942 = vmatprep.subr.bf16.mxu0 0
      %943 = vmatpush1.bf16.msra.mxu0 0
      %944 = vmatprep.subr.bf16.mxu0 0
      %945 = vmatpush1.bf16.msra.mxu0 0
      %946 = vmatprep.subr.bf16.mxu0 0
      %947 = vmatpush1.bf16.msra.mxu0 0
      %948 = vmatprep.subr.bf16.mxu0 0
      %949 = vmatpush1.bf16.msra.mxu0 0
      %950 = vmatprep.subr.bf16.mxu0 0
      %951 = vmatpush1.bf16.msra.mxu0 0
      %952 = vmatprep.subr.bf16.mxu0 0
      %953 = vmatpush1.bf16.msra.mxu0 0
      %954 = vmatprep.subr.bf16.mxu0 0
      %955 = vmatpush1.bf16.msra.mxu0 0
      %956 = vmatprep.subr.bf16.mxu0 0
      %957 = vmatpush1.bf16.msra.mxu0 0
      %958 = vmatprep.subr.bf16.mxu0 0
      %959 = vmatpush1.bf16.msra.mxu0 0
      %960 = vmatprep.subr.bf16.mxu0 0
      %961 = vmatpush1.bf16.msra.mxu0 0
      %962 = vmatprep.subr.bf16.mxu0 0
      %963 = vmatpush1.bf16.msra.mxu0 0
      %964 = vmatprep.subr.bf16.mxu0 0
      %965 = vmatpush1.bf16.msra.mxu0 0
      %966 = vmatprep.mubr.bf16.mxu0 0
      %967 = vmatmul.mubr.bf16.gmra.mrb[0].mxu0 %v929
      %v968 = vpop.f32.mrb[0].mxu0
      %v969 = vadd.f32 0.0, %v968
      %v970 = vpop.f32.mrb[0].mxu0
      %v971 = vpop.f32.mrb[0].mxu0
      %v972 = vpop.f32.mrb[0].mxu0
      %973 = vdwg.mxu0
      %v974 = vpack.c.bf16 %v969, %v969
      %s975 = scalar_lea.vmem %s3, 8
      %v976 = vld [vmem:[%s975] sm:$0xf]
      %v978 = vsel %vm548, %v974, 0
      %v981 = vsel %vm612, %v976, 0
      %983 = vmatprep.subr.bf16.mxu0 0
      %984 = vmatpush1.bf16.msra.mxu0 %v981
      %985 = vmatprep.subr.bf16.mxu0 0
      %986 = vmatpush1.bf16.msra.mxu0 0
      %987 = vmatprep.subr.bf16.mxu0 0
      %988 = vmatpush1.bf16.msra.mxu0 0
      %989 = vmatprep.subr.bf16.mxu0 0
      %990 = vmatpush1.bf16.msra.mxu0 0
      %991 = vmatprep.subr.bf16.mxu0 0
      %992 = vmatpush1.bf16.msra.mxu0 0
      %993 = vmatprep.subr.bf16.mxu0 0
      %994 = vmatpush1.bf16.msra.mxu0 0
      %995 = vmatprep.subr.bf16.mxu0 0
      %996 = vmatpush1.bf16.msra.mxu0 0
      %997 = vmatprep.subr.bf16.mxu0 0
      %998 = vmatpush1.bf16.msra.mxu0 0
      %999 = vmatprep.subr.bf16.mxu0 0
      %1000 = vmatpush1.bf16.msra.mxu0 0
      %1001 = vmatprep.subr.bf16.mxu0 0
      %1002 = vmatpush1.bf16.msra.mxu0 0
      %1003 = vmatprep.subr.bf16.mxu0 0
      %1004 = vmatpush1.bf16.msra.mxu0 0
      %1005 = vmatprep.subr.bf16.mxu0 0
      %1006 = vmatpush1.bf16.msra.mxu0 0
      %1007 = vmatprep.subr.bf16.mxu0 0
      %1008 = vmatpush1.bf16.msra.mxu0 0
      %1009 = vmatprep.subr.bf16.mxu0 0
      %1010 = vmatpush1.bf16.msra.mxu0 0
      %1011 = vmatprep.subr.bf16.mxu0 0
      %1012 = vmatpush1.bf16.msra.mxu0 0
      %1013 = vmatprep.subr.bf16.mxu0 0
      %1014 = vmatpush1.bf16.msra.mxu0 0
      %1015 = vmatprep.mubr.bf16.mxu0 0
      %1016 = vmatmul.mubr.bf16.gmra.mrb[0].mxu0 %v978
      %v1017 = vpop.f32.mrb[0].mxu0
      %v1018 = vadd.f32 0.0, %v1017
      %v1019 = vpop.f32.mrb[0].mxu0
      %v1020 = vpop.f32.mrb[0].mxu0
      %v1021 = vpop.f32.mrb[0].mxu0
      %1022 = vdwg.mxu0
      %v1023 = vadd.f32 %v859, %v1018
      %1024 = vrot.lane.b32.xlu0 %v543, 104
      %v1025 = vpop.permute.xlu0 %1024
      %1026 = vrot.lane.b32.xlu0 %v544, 72
      %v1027 = vpop.permute.xlu0 %1026
      %v1029 = vsel %vm548, %v1025, 0
      %v1032 = vsel %vm548, %v1027, 0
      %1034 = vmatprep.subr.bf16.mxu0 0
      %1035 = vmatpush1.bf16.xpose.msra.mxu0 %v1032
      %1036 = vmatprep.subr.bf16.mxu0 0
      %1037 = vmatpush1.bf16.xpose.msra.mxu0 0
      %1038 = vmatprep.subr.bf16.mxu0 0
      %1039 = vmatpush1.bf16.xpose.msra.mxu0 0
      %1040 = vmatprep.subr.bf16.mxu0 0
      %1041 = vmatpush1.bf16.xpose.msra.mxu0 0
      %1042 = vmatprep.subr.bf16.mxu0 0
      %1043 = vmatpush1.bf16.xpose.msra.mxu0 0
      %1044 = vmatprep.subr.bf16.mxu0 0
      %1045 = vmatpush1.bf16.xpose.msra.mxu0 0
      %1046 = vmatprep.subr.bf16.mxu0 0
      %1047 = vmatpush1.bf16.xpose.msra.mxu0 0
      %1048 = vmatprep.subr.bf16.mxu0 0
      %1049 = vmatpush1.bf16.xpose.msra.mxu0 0
      %1050 = vmatprep.subr.bf16.mxu0 0
      %1051 = vmatpush1.bf16.xpose.msra.mxu0 0
      %1052 = vmatprep.subr.bf16.mxu0 0
      %1053 = vmatpush1.bf16.xpose.msra.mxu0 0
      %1054 = vmatprep.subr.bf16.mxu0 0
      %1055 = vmatpush1.bf16.xpose.msra.mxu0 0
      %1056 = vmatprep.subr.bf16.mxu0 0
      %1057 = vmatpush1.bf16.xpose.msra.mxu0 0
      %1058 = vmatprep.subr.bf16.mxu0 0
      %1059 = vmatpush1.bf16.xpose.msra.mxu0 0
      %1060 = vmatprep.subr.bf16.mxu0 0
      %1061 = vmatpush1.bf16.xpose.msra.mxu0 0
      %1062 = vmatprep.subr.bf16.mxu0 0
      %1063 = vmatpush1.bf16.xpose.msra.mxu0 0
      %1064 = vmatprep.subr.bf16.mxu0 0
      %1065 = vmatpush1.bf16.xpose.msra.mxu0 0
      %1066 = vmatprep.mubr.bf16.mxu0 0
      %1067 = vmatmul.mubr.bf16.gmra.mrb[0].mxu0 %v1029
      %v1068 = vpop.f32.mrb[0].mxu0
      %v1069 = vadd.f32 %v542, %v1068
      %v1070 = vpop.f32.mrb[0].mxu0
      %v1071 = vpop.f32.mrb[0].mxu0
      %v1072 = vpop.f32.mrb[0].mxu0
      %1073 = vdwg.mxu0
      %v1074 = vsel %vm548, %v1069, -inf
      %1075 = vmax.xlane.f32.xlu0 %v1074
      %v1076 = vpop.xlane.xlu0 %1075
      %v1077 = vsub.f32 %v1069, %v1076
      %v1078 = vmul.f32 %v1077, 1.442695
      %v1079 = vpow.pop %v1078
      %v1080 = vsel %vm548, %v1079, 0.0
      %1081 = vadd.xlane.f32.xlu0 %v1080
      %v1082 = vpop.xlane.xlu0 %1081
      %v1083 = vrcp.pop %v1082
      %v1084 = vmul.f32 %v1079, %v1083
      %v1085 = vpack.c.bf16 %v1084, %v1084
      %1086 = vrot.lane.b32.xlu0 %v544, 40
      %v1087 = vpop.permute.xlu0 %1086
      %v1089 = vsel %vm548, %v1085, 0
      %v1092 = vsel %vm612, %v1087, 0
      %1094 = vmatprep.subr.bf16.mxu0 0
      %1095 = vmatpush1.bf16.msra.mxu0 %v1092
      %1096 = vmatprep.subr.bf16.mxu0 0
      %1097 = vmatpush1.bf16.msra.mxu0 0
      %1098 = vmatprep.subr.bf16.mxu0 0
      %1099 = vmatpush1.bf16.msra.mxu0 0
      %1100 = vmatprep.subr.bf16.mxu0 0
      %1101 = vmatpush1.bf16.msra.mxu0 0
      %1102 = vmatprep.subr.bf16.mxu0 0
      %1103 = vmatpush1.bf16.msra.mxu0 0
      %1104 = vmatprep.subr.bf16.mxu0 0
      %1105 = vmatpush1.bf16.msra.mxu0 0
      %1106 = vmatprep.subr.bf16.mxu0 0
      %1107 = vmatpush1.bf16.msra.mxu0 0
      %1108 = vmatprep.subr.bf16.mxu0 0
      %1109 = vmatpush1.bf16.msra.mxu0 0
      %1110 = vmatprep.subr.bf16.mxu0 0
      %1111 = vmatpush1.bf16.msra.mxu0 0
      %1112 = vmatprep.subr.bf16.mxu0 0
      %1113 = vmatpush1.bf16.msra.mxu0 0
      %1114 = vmatprep.subr.bf16.mxu0 0
      %1115 = vmatpush1.bf16.msra.mxu0 0
      %1116 = vmatprep.subr.bf16.mxu0 0
      %1117 = vmatpush1.bf16.msra.mxu0 0
      %1118 = vmatprep.subr.bf16.mxu0 0
      %1119 = vmatpush1.bf16.msra.mxu0 0
      %1120 = vmatprep.subr.bf16.mxu0 0
      %1121 = vmatpush1.bf16.msra.mxu0 0
      %1122 = vmatprep.subr.bf16.mxu0 0
      %1123 = vmatpush1.bf16.msra.mxu0 0
      %1124 = vmatprep.subr.bf16.mxu0 0
      %1125 = vmatpush1.bf16.msra.mxu0 0
      %1126 = vmatprep.mubr.bf16.mxu0 0
      %1127 = vmatmul.mubr.bf16.gmra.mrb[0].mxu0 %v1089
      %v1128 = vpop.f32.mrb[0].mxu0
      %v1129 = vadd.f32 0.0, %v1128
      %v1130 = vpop.f32.mrb[0].mxu0
      %v1131 = vpop.f32.mrb[0].mxu0
      %v1132 = vpop.f32.mrb[0].mxu0
      %1133 = vdwg.mxu0
      %v1134 = vpack.c.bf16 %v1129, %v1129
      %s1135 = scalar_lea.vmem %s3, 12
      %v1136 = vld [vmem:[%s1135] sm:$0xf]
      %v1138 = vsel %vm548, %v1134, 0
      %v1141 = vsel %vm612, %v1136, 0
      %1143 = vmatprep.subr.bf16.mxu0 0
      %1144 = vmatpush1.bf16.msra.mxu0 %v1141
      %1145 = vmatprep.subr.bf16.mxu0 0
      %1146 = vmatpush1.bf16.msra.mxu0 0
      %1147 = vmatprep.subr.bf16.mxu0 0
      %1148 = vmatpush1.bf16.msra.mxu0 0
      %1149 = vmatprep.subr.bf16.mxu0 0
      %1150 = vmatpush1.bf16.msra.mxu0 0
      %1151 = vmatprep.subr.bf16.mxu0 0
      %1152 = vmatpush1.bf16.msra.mxu0 0
      %1153 = vmatprep.subr.bf16.mxu0 0
      %1154 = vmatpush1.bf16.msra.mxu0 0
      %1155 = vmatprep.subr.bf16.mxu0 0
      %1156 = vmatpush1.bf16.msra.mxu0 0
      %1157 = vmatprep.subr.bf16.mxu0 0
      %1158 = vmatpush1.bf16.msra.mxu0 0
      %1159 = vmatprep.subr.bf16.mxu0 0
      %1160 = vmatpush1.bf16.msra.mxu0 0
      %1161 = vmatprep.subr.bf16.mxu0 0
      %1162 = vmatpush1.bf16.msra.mxu0 0
      %1163 = vmatprep.subr.bf16.mxu0 0
      %1164 = vmatpush1.bf16.msra.mxu0 0
      %1165 = vmatprep.subr.bf16.mxu0 0
      %1166 = vmatpush1.bf16.msra.mxu0 0
      %1167 = vmatprep.subr.bf16.mxu0 0
      %1168 = vmatpush1.bf16.msra.mxu0 0
      %1169 = vmatprep.subr.bf16.mxu0 0
      %1170 = vmatpush1.bf16.msra.mxu0 0
      %1171 = vmatprep.subr.bf16.mxu0 0
      %1172 = vmatpush1.bf16.msra.mxu0 0
      %1173 = vmatprep.subr.bf16.mxu0 0
      %1174 = vmatpush1.bf16.msra.mxu0 0
      %1175 = vmatprep.mubr.bf16.mxu0 0
      %1176 = vmatmul.mubr.bf16.gmra.mrb[0].mxu0 %v1138
      %v1177 = vpop.f32.mrb[0].mxu0
      %v1178 = vadd.f32 0.0, %v1177
      %v1179 = vpop.f32.mrb[0].mxu0
      %v1180 = vpop.f32.mrb[0].mxu0
      %v1181 = vpop.f32.mrb[0].mxu0
      %1182 = vdwg.mxu0
      %v1183 = vadd.f32 %v1023, %v1178
      %v1184 = vadd.f32 %v437, %v1183
      %v1185 = vld [vmem:[%s4] sm:$0x1]
      %v1187 = vlaneseq
      %v1188 = vshrl.u32 %v1187, 7
      %v1189 = vsub.s32 0, %v1188
      %v1190 = vrot.slane %v1185, %v1189
      %v1192 = vadd.f32 %v1184, %v1190
      %v1193 = vld [vmem:[%s7] sm:$0x1]
      %v1194 = vld [vmem:[%s8] sm:$0x1]
      %v1195 = vsel %vm440, %v1192, 0.0
      %1196 = vadd.xlane.f32.xlu0 %v1195
      %v1197 = vpop.xlane.xlu0 %1196
      %v1198 = vmul.f32 %v1197, %v444
      %v1199 = vsub.f32 %v1192, %v1198
      %v1200 = vmul.f32 %v1199, %v1199
      %v1201 = vsel %vm440, %v1200, 0.0
      %1202 = vadd.xlane.f32.xlu0 %v1201
      %v1203 = vpop.xlane.xlu0 %1202
      %v1204 = vmul.f32 %v1203, %v444
      %v1205 = vadd.f32 %v1204, 1e-05
      %v1206 = vrsqrt.pop %v1205
      %v1207 = vmul.f32 %v1199, %v1206
      %v1209 = vlaneseq
      %v1210 = vshrl.u32 %v1209, 7
      %v1211 = vsub.s32 0, %v1210
      %v1212 = vrot.slane %v1193, %v1211
      %v1214 = vmul.f32 %v1207, %v1212
      %v1216 = vlaneseq
      %v1217 = vshrl.u32 %v1216, 7
      %v1218 = vsub.s32 0, %v1217
      %v1219 = vrot.slane %v1194, %v1218
      %v1221 = vadd.f32 %v1214, %v1219
      %v1222 = vpack.c.bf16 %v1221, %v1221
      %v1223 = vld [vmem:[%s9] sm:$0xf]
      %v1224 = vld [vmem:[%s9 + $0x4] sm:$0xf]
      %v1225 = vld [vmem:[%s9 + $0x8] sm:$0xf]
      %v1226 = vld [vmem:[%s9 + $0xc] sm:$0xf]
      %v1227 = vld [vmem:[%s10] sm:$0x1]
      %v1229 = vlaneseq
      %v1230 = vshrl.u32 %v1229, 7
      %v1231 = vsub.s32 0, %v1230
      %v1232 = vrot.slane %v1227, %v1231
      %v1238 = vunpack.c.l.b16 %v1223
      %v1239 = vunpack.c.l.b16 %v1224
      %v1240 = vunpack.c.l.b16 %v1225
      %v1241 = vunpack.c.l.b16 %v1226
      %v1242 = vpack.c.b16 %v1239, %v1238
      %v1243 = vpack.c.b16 %v1241, %v1240
      %v1247 = vsel %vm440, %v1222, 0
      %1249 = vmatprep.subr.bf16.mxu0 0
      %1250 = vmatpush1.bf16.msra.mxu0 %v1242
      %1251 = vmatprep.subr.bf16.mxu0 0
      %1252 = vmatpush1.bf16.msra.mxu0 %v1243
      %1253 = vmatprep.subr.bf16.mxu0 0
      %1254 = vmatpush1.bf16.msra.mxu0 0
      %1255 = vmatprep.subr.bf16.mxu0 0
      %1256 = vmatpush1.bf16.msra.mxu0 0
      %1257 = vmatprep.subr.bf16.mxu0 0
      %1258 = vmatpush1.bf16.msra.mxu0 0
      %1259 = vmatprep.subr.bf16.mxu0 0
      %1260 = vmatpush1.bf16.msra.mxu0 0
      %1261 = vmatprep.subr.bf16.mxu0 0
      %1262 = vmatpush1.bf16.msra.mxu0 0
      %1263 = vmatprep.subr.bf16.mxu0 0
      %1264 = vmatpush1.bf16.msra.mxu0 0
      %1265 = vmatprep.subr.bf16.mxu0 0
      %1266 = vmatpush1.bf16.msra.mxu0 0
      %1267 = vmatprep.subr.bf16.mxu0 0
      %1268 = vmatpush1.bf16.msra.mxu0 0
      %1269 = vmatprep.subr.bf16.mxu0 0
      %1270 = vmatpush1.bf16.msra.mxu0 0
      %1271 = vmatprep.subr.bf16.mxu0 0
      %1272 = vmatpush1.bf16.msra.mxu0 0
      %1273 = vmatprep.subr.bf16.mxu0 0
      %1274 = vmatpush1.bf16.msra.mxu0 0
      %1275 = vmatprep.subr.bf16.mxu0 0
      %1276 = vmatpush1.bf16.msra.mxu0 0
      %1277 = vmatprep.subr.bf16.mxu0 0
      %1278 = vmatpush1.bf16.msra.mxu0 0
      %1279 = vmatprep.subr.bf16.mxu0 0
      %1280 = vmatpush1.bf16.msra.mxu0 0
      %1281 = vmatprep.mubr.bf16.mxu0 0
      %1282 = vmatmul.mubr.bf16.gmra.mrb[0].mxu0 %v1247
      %v1283 = vpop.f32.mrb[0].mxu0
      %v1284 = vadd.f32 %v1232, %v1283
      %v1285 = vpop.f32.mrb[0].mxu0
      %v1286 = vpop.f32.mrb[0].mxu0
      %v1287 = vpop.f32.mrb[0].mxu0
      %1288 = vdwg.mxu0
      %v1289 = vmax.f32 %v1284, 0.0
      %v1290 = vpack.c.bf16 %v1289, %v1289
      %v1291 = vld [vmem:[%s11] sm:$0xf]
      %v1292 = vld [vmem:[%s11 + $0x4] sm:$0xf]
      %v1293 = vld [vmem:[%s11 + $0x8] sm:$0xf]
      %v1294 = vld [vmem:[%s11 + $0xc] sm:$0xf]
      %v1295 = vld [vmem:[%s11 + $0x10] sm:$0xf]
      %v1296 = vld [vmem:[%s11 + $0x14] sm:$0xf]
      %v1297 = vld [vmem:[%s11 + $0x18] sm:$0xf]
      %v1298 = vld [vmem:[%s11 + $0x1c] sm:$0xf]
      %v1299 = vld [vmem:[%s11 + $0x20] sm:$0xf]
      %v1300 = vld [vmem:[%s11 + $0x24] sm:$0xf]
      %v1301 = vld [vmem:[%s11 + $0x28] sm:$0xf]
      %v1302 = vld [vmem:[%s11 + $0x2c] sm:$0xf]
      %v1303 = vld [vmem:[%s11 + $0x30] sm:$0xf]
      %v1304 = vld [vmem:[%s11 + $0x34] sm:$0xf]
      %v1305 = vld [vmem:[%s11 + $0x38] sm:$0xf]
      %v1306 = vld [vmem:[%s11 + $0x3c] sm:$0xf]
      %v1307 = vld [vmem:[%s12] sm:$0x1]
      %v1309 = vlaneseq
      %v1310 = vshrl.u32 %v1309, 7
      %v1311 = vsub.s32 0, %v1310
      %v1312 = vrot.slane %v1307, %v1311
      %v1330 = vunpack.c.l.b16 %v1291
      %v1331 = vunpack.c.l.b16 %v1292
      %v1332 = vunpack.c.l.b16 %v1293
      %v1333 = vunpack.c.l.b16 %v1294
      %v1334 = vunpack.c.l.b16 %v1295
      %v1335 = vunpack.c.l.b16 %v1296
      %v1336 = vunpack.c.l.b16 %v1297
      %v1337 = vunpack.c.l.b16 %v1298
      %v1338 = vunpack.c.l.b16 %v1299
      %v1339 = vunpack.c.l.b16 %v1300
      %v1340 = vunpack.c.l.b16 %v1301
      %v1341 = vunpack.c.l.b16 %v1302
      %v1342 = vunpack.c.l.b16 %v1303
      %v1343 = vunpack.c.l.b16 %v1304
      %v1344 = vunpack.c.l.b16 %v1305
      %v1345 = vunpack.c.l.b16 %v1306
      %v1346 = vpack.c.b16 %v1331, %v1330
      %v1347 = vpack.c.b16 %v1333, %v1332
      %v1348 = vpack.c.b16 %v1335, %v1334
      %v1349 = vpack.c.b16 %v1337, %v1336
      %v1350 = vpack.c.b16 %v1339, %v1338
      %v1351 = vpack.c.b16 %v1341, %v1340
      %v1352 = vpack.c.b16 %v1343, %v1342
      %v1353 = vpack.c.b16 %v1345, %v1344
      %1362 = vmatprep.subr.bf16.mxu0 0
      %1363 = vmatpush1.bf16.msra.mxu0 %v1346
      %1364 = vmatprep.subr.bf16.mxu0 0
      %1365 = vmatpush1.bf16.msra.mxu0 %v1347
      %1366 = vmatprep.subr.bf16.mxu0 0
      %1367 = vmatpush1.bf16.msra.mxu0 %v1348
      %1368 = vmatprep.subr.bf16.mxu0 0
      %1369 = vmatpush1.bf16.msra.mxu0 %v1349
      %1370 = vmatprep.subr.bf16.mxu0 0
      %1371 = vmatpush1.bf16.msra.mxu0 %v1350
      %1372 = vmatprep.subr.bf16.mxu0 0
      %1373 = vmatpush1.bf16.msra.mxu0 %v1351
      %1374 = vmatprep.subr.bf16.mxu0 0
      %1375 = vmatpush1.bf16.msra.mxu0 %v1352
      %1376 = vmatprep.subr.bf16.mxu0 0
      %1377 = vmatpush1.bf16.msra.mxu0 %v1353
      %1378 = vmatprep.subr.bf16.mxu0 0
      %1379 = vmatpush1.bf16.msra.mxu0 0
      %1380 = vmatprep.subr.bf16.mxu0 0
      %1381 = vmatpush1.bf16.msra.mxu0 0
      %1382 = vmatprep.subr.bf16.mxu0 0
      %1383 = vmatpush1.bf16.msra.mxu0 0
      %1384 = vmatprep.subr.bf16.mxu0 0
      %1385 = vmatpush1.bf16.msra.mxu0 0
      %1386 = vmatprep.subr.bf16.mxu0 0
      %1387 = vmatpush1.bf16.msra.mxu0 0
      %1388 = vmatprep.subr.bf16.mxu0 0
      %1389 = vmatpush1.bf16.msra.mxu0 0
      %1390 = vmatprep.subr.bf16.mxu0 0
      %1391 = vmatpush1.bf16.msra.mxu0 0
      %1392 = vmatprep.subr.bf16.mxu0 0
      %1393 = vmatpush1.bf16.msra.mxu0 0
      %1394 = vmatprep.mubr.bf16.mxu0 0
      %1395 = vmatmul.mubr.bf16.gmra.mrb[0].mxu0 %v1290
      %v1396 = vpop.f32.mrb[0].mxu0
      %v1397 = vadd.f32 %v1312, %v1396
      %v1398 = vpop.f32.mrb[0].mxu0
      %v1399 = vpop.f32.mrb[0].mxu0
      %v1400 = vpop.f32.mrb[0].mxu0
      %1401 = vdwg.mxu0
      %v1402 = vadd.f32 %v1192, %v1397
      %1403 = vst.msk [vmem:[%s435] sm:$0xff] %vm440, %v1402
      %p1404 = scmp.lt.s32.totalorder %s24, 1
      %s1405 = scalar_select %p1404, %s24, 1
      %s1406 = smul.addr %s1405, 8
      %s1407 = scalar_lea.vmem %s13, %s1406
      // Predicated region
      $region73: #{transformer_based_forward.9} parent=71 // pred_check
        %p1408 = pneg %p320
      $region74: #{transformer_based_forward.9} parent=71 // pred_check_branch
        %1410 = sbr.rel (%p1408) target = $region76
      $region75: #{transformer_based_forward.9} parent=71 // pred_region
        _
      $region76: #{transformer_based_forward.9} parent=71 // pred_fallthru
        _
    $region72: #{transformer_based_forward.9} parent=5 // pred_fallthru
      _
    %p1411 = scmp.le.s32.totalorder 2, %s19
    // Predicated region
    $region77: #{transformer_based_forward.9} parent=5 // pred_check
      %p1412 = pneg %p1411
    $region78: #{transformer_based_forward.9} parent=5 // pred_check_branch
      %1414 = sbr.rel (%p1412) target = $region80
    $region79: #{transformer_based_forward.9} parent=5 // pred_region
      %s1415 = ssub.s32 %s19, 2
      // Predicated region
      $region81: #{transformer_based_forward.9} parent=79 // pred_check
        %p1416 = pneg %p326
      $region82: #{transformer_based_forward.9} parent=79 // pred_check_branch
        %1418 = sbr.rel (%p1416) target = $region84
      $region83: #{transformer_based_forward.9} parent=79 // pred_region
        %p1419 = scmp.lt.s32.totalorder %s25, 1
        %s1420 = scalar_select %p1419, %s25, 1
        %s1421 = smul.addr %s1420, 8
        %s1422 = scalar_lea.vmem %s13, %s1421
      $region84: #{transformer_based_forward.9} parent=79 // pred_fallthru
        _
    $region80: #{transformer_based_forward.9} parent=5 // pred_fallthru
      _
  $region6: #{transformer_based_forward.9} parent=0 // loop_footer
    %s23 = sadd.s32 1, %s19
  $region7: #{transformer_based_forward.9} parent=0 // loop_footer_branch
    %18 = sbr.rel target = $region3
  $region8: #{transformer_based_forward.9} parent=0 // loop_exit
    _

</llo_original>
